<compile_context>
chip_gen: v7x
topology: tpu7x:2x2x1
jax: 0.10.0
libtpu: 0.0.40
codegen_flags: <defaults>
</compile_context>

<pallas_src>
import functools

import jax
import jax.numpy as jnp
from jax.experimental import pallas as pl
from jax.experimental.pallas import tpu as pltpu

_EPS = 1e-5
_LRELU_SLOPE = 0.01  # torch.nn.functional.leaky_relu default


def _round_up(x, m):
    return (x + m - 1) // m * m


def _layernorm(x, gamma, beta):
    mu = jnp.mean(x, axis=-1, keepdims=True)
    var = jnp.mean((x - mu) ** 2, axis=-1, keepdims=True)
    return (x - mu) * jax.lax.rsqrt(var + _EPS) * gamma + beta


def _atom2bond_kernel(
    edge_ref, idx_ref,                      # pipelined per-edge tiles
    atom_ref,                               # whole atom table, VMEM resident
    w1_ref, b1_ref, g1_ref, be1_ref,        # lin1 + lnorm_lin1
    watt_ref, batt_ref,                     # atten_mid (weight as a row vector)
    wba_ref, wbs_ref,                       # folded lin_beta rows
    ge_ref, bee_ref,                        # lnorm_e
    out_ref,
):
    f32 = jnp.float32
    edge = edge_ref[...].astype(f32)                      # [TE, edge_dim]
    atom = atom_ref[...].astype(f32)                      # [Np, node_dim]
    idx = idx_ref[...]                                    # [TE, 1] int32

    # --- in-kernel source-node gather: exact one-hot @ atom on the MXU ---
    # TODO(synk): for very large atom tables that don't fit VMEM, switch to a
    # manual DMA row-gather instead of the VMEM-resident one-hot matmul.
    n_nodes = atom.shape[0]
    node_iota = jax.lax.broadcasted_iota(jnp.int32, (1, n_nodes), 1)
    onehot = (idx == node_iota).astype(f32)               # [TE, Np]
    src = jnp.dot(onehot, atom, preferred_element_type=f32,
                  precision=jax.lax.Precision.HIGHEST)    # [TE, node_dim]

    # --- lin1 + LayerNorm on edge features (MXU) ---
    eh = jnp.dot(edge, w1_ref[...], preferred_element_type=f32,
                 precision=jax.lax.Precision.HIGHEST) + b1_ref[...]
    eh = _layernorm(eh, g1_ref[...], be1_ref[...])

    # --- attention over {src, edge}: width-1 projections on VPU (mul) + XLU (reduce) ---
    watt = watt_ref[...]                                  # [1, node_dim]
    a_src = jnp.sum(src * watt, axis=-1, keepdims=True) + batt_ref[...]
    a_edge = jnp.sum(eh * watt, axis=-1, keepdims=True) + batt_ref[...]
    a_src = jnp.where(a_src > 0, a_src, _LRELU_SLOPE * a_src)
    a_edge = jnp.where(a_edge > 0, a_edge, _LRELU_SLOPE * a_edge)
    m = jnp.maximum(a_src, a_edge)
    e_src = jnp.exp(a_src - m)
    e_edge = jnp.exp(a_edge - m)
    inv_den = pl.reciprocal(e_src + e_edge, approx=True)  # EUP slot (otherwise idle)
    h_attn = (e_src * inv_den) * src + (e_edge * inv_den) * eh

    # --- folded beta gate: [h, s, h-s]@W_beta == h@(w1+w3) + s@(w2-w3) ---
    beta_logit = (jnp.sum(h_attn * wba_ref[...], axis=-1, keepdims=True)
                  + jnp.sum(src * wbs_ref[...], axis=-1, keepdims=True))
    beta = jax.nn.sigmoid(beta_logit)                     # [TE, 1]
    h = beta * src + (1.0 - beta) * h_attn

    # --- lnorm_e + ReLU ---
    out = _layernorm(h, ge_ref[...], bee_ref[...])
    out_ref[...] = jnp.maximum(out, 0.0).astype(out_ref.dtype)


@functools.partial(jax.jit, static_argnames=("tile_e",))
def atom2bond_forward(atom_emb, edge_emb, src_idx, params, *, tile_e=1024):
    """atom_emb: [N, node_dim], edge_emb: [E, edge_dim], src_idx: [E] int32."""
    node_dim = params["w1"].shape[1]
    edge_dim = edge_emb.shape[1]
    E = edge_emb.shape[0]
    N = atom_emb.shape[0]

    # Edge-tile size: big enough to amortise per-grid-step pipeline overhead,
    # never larger than the (padded) edge count, multiple of 16 so bf16 tiles
    # also satisfy the sublane tiling constraint. E is padded to a tile multiple
    # and the padded rows are sliced off at the end.
    tile = min(int(tile_e), _round_up(E, 16))
    tile = max(16, _round_up(tile, 16))
    e_pad = _round_up(E, tile)
    n_pad = _round_up(N, 8)

    out_dtype = edge_emb.dtype  # keep caller dtype (e.g. bf16) at the HBM boundary

    edge_fea = jnp.pad(edge_emb, ((0, e_pad - E), (0, 0)))
    idx2d = jnp.pad(src_idx.astype(jnp.int32), (0, e_pad - E)).reshape(e_pad, 1)
    atom_fea = jnp.pad(atom_emb, ((0, n_pad - N), (0, 0)))

    # Fold lin_beta([h, s, h-s]) = h @ (w1+w3) + s @ (w2-w3).
    wb = params["w_beta"].astype(jnp.float32)             # [3*node_dim, 1]
    wb1, wb2, wb3 = wb[:node_dim], wb[node_dim:2 * node_dim], wb[2 * node_dim:]
    wba = (wb1 + wb3).reshape(1, node_dim)
    wbs = (wb2 - wb3).reshape(1, node_dim)

    row = lambda v: v.reshape(1, -1).astype(jnp.float32)
    vmem = pl.BlockSpec(memory_space=pltpu.MemorySpace.VMEM)  # whole array, not pipelined

    grid_spec = pltpu.PrefetchScalarGridSpec(
        num_scalar_prefetch=0,
        grid=(e_pad // tile,),
        in_specs=[
            pl.BlockSpec((tile, edge_dim), lambda i: (i, 0)),  # edge features
            pl.BlockSpec((tile, 1), lambda i: (i, 0)),         # source indices
            vmem,                                              # atom table
            vmem, vmem, vmem, vmem,                            # w1, b1, ln1_g, ln1_b
            vmem, vmem,                                        # w_att row, b_att
            vmem, vmem,                                        # wba, wbs
            vmem, vmem,                                        # lne_g, lne_b
        ],
        out_specs=pl.BlockSpec((tile, node_dim), lambda i: (i, 0)),
    )

    out = pl.pallas_call(
        _atom2bond_kernel,
        out_shape=jax.ShapeDtypeStruct((e_pad, node_dim), out_dtype),
        grid_spec=grid_spec,
        compiler_params=pltpu.CompilerParams(
            dimension_semantics=("parallel",),
            # Plenty of headroom at these tile sizes on v5e/v6e/v7x; raise if
            # node_dim/edge_dim grow substantially.
            vmem_limit_bytes=32 * 1024 * 1024,
        ),
    )(
        edge_fea, idx2d, atom_fea,
        params["w1"].astype(jnp.float32), row(params["b1"]),
        row(params["ln1_g"]), row(params["ln1_b"]),
        row(params["w_att"]), row(params["b_att"]),
        wba, wbs,
        row(params["lne_g"]), row(params["lne_b"]),
    )
    return out[:E]


def _reference_forward(atom_emb, edge_emb, src_idx, params):
    """Pure-JAX reference mirroring the PyTorch module (p_drop=0)."""
    x = atom_emb.astype(jnp.float32)
    e = edge_emb.astype(jnp.float32)
    src = jnp.take(x, src_idx, axis=0)
    eh = jnp.dot(e, params["w1"]) + params["b1"]
    eh = _layernorm(eh, params["ln1_g"], params["ln1_b"])
    mid_cat = jnp.stack([src, eh], axis=1)                              # [E, 2, D]
    mid_attn = jnp.matmul(mid_cat, params["w_att"])[..., 0] + params["b_att"]  # [E, 2]
    mid_attn = jnp.where(mid_attn > 0, mid_attn, _LRELU_SLOPE * mid_attn)
    h_atten = jax.nn.softmax(mid_attn, axis=1)
    h_attn_fea = jnp.einsum("nhd,nh->nd", mid_cat, h_atten)
    beta = jax.nn.sigmoid(
        jnp.concatenate([h_attn_fea, src, h_attn_fea - src], axis=-1) @ params["w_beta"]
    )
    h = beta * src + (1.0 - beta) * h_attn_fea
    return jnp.maximum(_layernorm(h, params["lne_g"], params["lne_b"]), 0.0)


if __name__ == "__main__":
    node_dim, edge_dim = 32, 16
    n_nodes, n_edges = 12, 80

    key = jax.random.PRNGKey(0)
    ks = jax.random.split(key, 8)

    params = {
        "w1": jax.random.normal(ks[0], (edge_dim, node_dim), jnp.float32) * 0.1,
        "b1": jax.random.normal(ks[1], (node_dim,), jnp.float32) * 0.1,
        "ln1_g": jnp.ones((node_dim,), jnp.float32),
        "ln1_b": jnp.zeros((node_dim,), jnp.float32),
        "w_att": jax.random.normal(ks[2], (node_dim, 1), jnp.float32) * 0.1,
        "b_att": jax.random.normal(ks[3], (1,), jnp.float32) * 0.1,
        "w_beta": jax.random.normal(ks[4], (3 * node_dim, 1), jnp.float32) * 0.1,
        "lne_g": jnp.ones((node_dim,), jnp.float32),
        "lne_b": jnp.zeros((node_dim,), jnp.float32),
    }

    atom_emb = jax.random.normal(ks[5], (n_nodes, node_dim), jnp.float32)
    edge_emb = jax.random.normal(ks[6], (n_edges, edge_dim), jnp.float32)
    src_idx = jax.random.randint(ks[7], (n_edges,), 0, n_nodes, dtype=jnp.int32)

    # --- f32 path with a small tile: exercises multi-step grid + edge padding/slicing ---
    out = atom2bond_forward(atom_emb, edge_emb, src_idx, params, tile_e=32)
    out = jax.block_until_ready(out)
    with jax.default_matmul_precision("highest"):
        ref = _reference_forward(atom_emb, edge_emb, src_idx, params)
    assert out.shape == (n_edges, node_dim)
    # Tolerance covers the EUP approx-reciprocal used for the 2-way softmax denominator.
    assert jnp.allclose(out, ref, atol=2e-3, rtol=2e-3), float(jnp.max(jnp.abs(out - ref)))

    # --- bf16 HBM-boundary path with the default (large) tile ---
    out_bf16 = atom2bond_forward(
        atom_emb.astype(jnp.bfloat16), edge_emb.astype(jnp.bfloat16), src_idx, params)
    out_bf16 = jax.block_until_ready(out_bf16)
    with jax.default_matmul_precision("highest"):
        ref_bf16 = _reference_forward(
            atom_emb.astype(jnp.bfloat16).astype(jnp.float32),
            edge_emb.astype(jnp.bfloat16).astype(jnp.float32),
            src_idx, params)
    assert out_bf16.dtype == jnp.bfloat16
    assert jnp.allclose(out_bf16.astype(jnp.float32), ref_bf16, atol=4e-2, rtol=4e-2), \
        float(jnp.max(jnp.abs(out_bf16.astype(jnp.float32) - ref_bf16)))

    print("KERNEL_OK")
</pallas_src>

<mosaic_0001>
module attributes {stable_mosaic.version = 11 : i64} {
  func.func @_atom2bond_kernel(%arg0: i32, %arg1: memref<32x16xf32, #tpu.memory_space<vmem>>, %arg2: memref<32x1xi32, #tpu.memory_space<vmem>>, %arg3: memref<16x32xf32, #tpu.memory_space<vmem>>, %arg4: memref<16x32xf32, #tpu.memory_space<vmem>>, %arg5: memref<1x32xf32, #tpu.memory_space<vmem>>, %arg6: memref<1x32xf32, #tpu.memory_space<vmem>>, %arg7: memref<1x32xf32, #tpu.memory_space<vmem>>, %arg8: memref<1x32xf32, #tpu.memory_space<vmem>>, %arg9: memref<1x1xf32, #tpu.memory_space<vmem>>, %arg10: memref<1x32xf32, #tpu.memory_space<vmem>>, %arg11: memref<1x32xf32, #tpu.memory_space<vmem>>, %arg12: memref<1x32xf32, #tpu.memory_space<vmem>>, %arg13: memref<1x32xf32, #tpu.memory_space<vmem>>, %arg14: memref<32x32xf32, #tpu.memory_space<vmem>>) attributes {dimension_semantics = [#tpu.dimension_semantics<parallel>], iteration_bounds = array<i64: 3>, scalar_prefetch = 0 : i64, scratch_operands = 0 : i64, tpu.core_type = #tpu.core_type<tc>, window_params = [{transform_indices = @transform_0, window_bounds = array<i64: 32, 16>}, {transform_indices = @transform_1, window_bounds = array<i64: 32, 1>}, {pipeline_mode = #tpu.pipeline_mode<synchronous>, transform_indices = @transform_2, window_bounds = array<i64: 16, 32>}, {pipeline_mode = #tpu.pipeline_mode<synchronous>, transform_indices = @transform_3, window_bounds = array<i64: 16, 32>}, {pipeline_mode = #tpu.pipeline_mode<synchronous>, transform_indices = @transform_4, window_bounds = array<i64: 1, 32>}, {pipeline_mode = #tpu.pipeline_mode<synchronous>, transform_indices = @transform_5, window_bounds = array<i64: 1, 32>}, {pipeline_mode = #tpu.pipeline_mode<synchronous>, transform_indices = @transform_6, window_bounds = array<i64: 1, 32>}, {pipeline_mode = #tpu.pipeline_mode<synchronous>, transform_indices = @transform_7, window_bounds = array<i64: 1, 32>}, {pipeline_mode = #tpu.pipeline_mode<synchronous>, transform_indices = @transform_8, window_bounds = array<i64: 1, 1>}, {pipeline_mode = #tpu.pipeline_mode<synchronous>, transform_indices = @transform_9, window_bounds = array<i64: 1, 32>}, {pipeline_mode = #tpu.pipeline_mode<synchronous>, transform_indices = @transform_10, window_bounds = array<i64: 1, 32>}, {pipeline_mode = #tpu.pipeline_mode<synchronous>, transform_indices = @transform_11, window_bounds = array<i64: 1, 32>}, {pipeline_mode = #tpu.pipeline_mode<synchronous>, transform_indices = @transform_12, window_bounds = array<i64: 1, 32>}, {transform_indices = @transform_13, window_bounds = array<i64: 32, 32>}]} {
    %c0 = arith.constant 0 : index
    %c0_0 = arith.constant 0 : index
    %0 = vector.load %arg1[%c0, %c0_0] : memref<32x16xf32, #tpu.memory_space<vmem>>, vector<32x16xf32>
    %c0_1 = arith.constant 0 : index
    %c0_2 = arith.constant 0 : index
    %1 = vector.load %arg3[%c0_1, %c0_2] : memref<16x32xf32, #tpu.memory_space<vmem>>, vector<16x32xf32>
    %c0_3 = arith.constant 0 : index
    %c0_4 = arith.constant 0 : index
    %2 = vector.load %arg2[%c0_3, %c0_4] : memref<32x1xi32, #tpu.memory_space<vmem>>, vector<32x1xi32>
    %3 = tpu.iota {dimensions = array<i32: 1>} : vector<1x16xi32>
    %4 = vector.broadcast %2 : vector<32x1xi32> to vector<32x16xi32>
    %5 = vector.broadcast %3 : vector<1x16xi32> to vector<32x16xi32>
    %6 = arith.cmpi eq, %4, %5 : vector<32x16xi32>
    %7 = arith.extui %6 : vector<32x16xi1> to vector<32x16xi32>
    %8 = arith.sitofp %7 : vector<32x16xi32> to vector<32x16xf32>
    %cst = arith.constant dense<0.000000e+00> : vector<32x32xf32>
    %9 = tpu.matmul %8, %1, %cst {dimension_numbers = #tpu.dot_dimension_numbers<[1], [0], [0], [1], [0, 0, 1, 1], [], []>, precision = #tpu.contract_precision<fp32>} : vector<32x16xf32>, vector<16x32xf32>, vector<32x32xf32> -> vector<32x32xf32>
    %c0_5 = arith.constant 0 : index
    %c0_6 = arith.constant 0 : index
    %10 = vector.load %arg4[%c0_5, %c0_6] : memref<16x32xf32, #tpu.memory_space<vmem>>, vector<16x32xf32>
    %cst_7 = arith.constant dense<0.000000e+00> : vector<32x32xf32>
    %11 = tpu.matmul %0, %10, %cst_7 {dimension_numbers = #tpu.dot_dimension_numbers<[1], [0], [0], [1], [0, 0, 1, 1], [], []>, precision = #tpu.contract_precision<fp32>} : vector<32x16xf32>, vector<16x32xf32>, vector<32x32xf32> -> vector<32x32xf32>
    %c0_8 = arith.constant 0 : index
    %c0_9 = arith.constant 0 : index
    %12 = vector.load %arg5[%c0_8, %c0_9] : memref<1x32xf32, #tpu.memory_space<vmem>>, vector<1x32xf32>
    %13 = vector.broadcast %12 : vector<1x32xf32> to vector<32x32xf32>
    %14 = arith.addf %11, %13 : vector<32x32xf32>
    %c0_10 = arith.constant 0 : index
    %c0_11 = arith.constant 0 : index
    %15 = vector.load %arg6[%c0_10, %c0_11] : memref<1x32xf32, #tpu.memory_space<vmem>>, vector<1x32xf32>
    %c0_12 = arith.constant 0 : index
    %c0_13 = arith.constant 0 : index
    %16 = vector.load %arg7[%c0_12, %c0_13] : memref<1x32xf32, #tpu.memory_space<vmem>>, vector<1x32xf32>
    %cst_14 = arith.constant dense<0.000000e+00> : vector<32xf32>
    %17 = vector.multi_reduction <add>, %14, %cst_14 [1] : vector<32x32xf32> to vector<32xf32>
    %18 = vector.shape_cast %17 : vector<32xf32> to vector<32x1xf32>
    %cst_15 = arith.constant 3.200000e+01 : f32
    %19 = vector.broadcast %cst_15 : f32 to vector<32x1xf32>
    %20 = arith.divf %18, %19 : vector<32x1xf32>
    %21 = vector.broadcast %20 : vector<32x1xf32> to vector<32x32xf32>
    %22 = arith.subf %14, %21 : vector<32x32xf32>
    %23 = arith.mulf %22, %22 : vector<32x32xf32>
    %cst_16 = arith.constant dense<0.000000e+00> : vector<32xf32>
    %24 = vector.multi_reduction <add>, %23, %cst_16 [1] : vector<32x32xf32> to vector<32xf32>
    %25 = vector.shape_cast %24 : vector<32xf32> to vector<32x1xf32>
    %cst_17 = arith.constant 3.200000e+01 : f32
    %26 = vector.broadcast %cst_17 : f32 to vector<32x1xf32>
    %27 = arith.divf %25, %26 : vector<32x1xf32>
    %28 = vector.broadcast %20 : vector<32x1xf32> to vector<32x32xf32>
    %29 = arith.subf %14, %28 : vector<32x32xf32>
    %cst_18 = arith.constant 9.99999974E-6 : f32
    %30 = vector.broadcast %cst_18 : f32 to vector<32x1xf32>
    %31 = arith.addf %27, %30 : vector<32x1xf32>
    %32 = math.rsqrt %31 : vector<32x1xf32>
    %33 = vector.broadcast %32 : vector<32x1xf32> to vector<32x32xf32>
    %34 = arith.mulf %29, %33 : vector<32x32xf32>
    %35 = vector.broadcast %15 : vector<1x32xf32> to vector<32x32xf32>
    %36 = arith.mulf %34, %35 : vector<32x32xf32>
    %37 = vector.broadcast %16 : vector<1x32xf32> to vector<32x32xf32>
    %38 = arith.addf %36, %37 : vector<32x32xf32>
    %c0_19 = arith.constant 0 : index
    %c0_20 = arith.constant 0 : index
    %39 = vector.load %arg8[%c0_19, %c0_20] : memref<1x32xf32, #tpu.memory_space<vmem>>, vector<1x32xf32>
    %40 = vector.broadcast %39 : vector<1x32xf32> to vector<32x32xf32>
    %41 = arith.mulf %9, %40 : vector<32x32xf32>
    %cst_21 = arith.constant dense<0.000000e+00> : vector<32xf32>
    %42 = vector.multi_reduction <add>, %41, %cst_21 [1] : vector<32x32xf32> to vector<32xf32>
    %43 = vector.shape_cast %42 : vector<32xf32> to vector<32x1xf32>
    %c0_22 = arith.constant 0 : index
    %c0_23 = arith.constant 0 : index
    %44 = vector.load %arg9[%c0_22, %c0_23] : memref<1x1xf32, #tpu.memory_space<vmem>>, vector<1x1xf32>
    %45 = vector.broadcast %44 : vector<1x1xf32> to vector<32x1xf32>
    %46 = arith.addf %43, %45 : vector<32x1xf32>
    %47 = vector.broadcast %39 : vector<1x32xf32> to vector<32x32xf32>
    %48 = arith.mulf %38, %47 : vector<32x32xf32>
    %cst_24 = arith.constant dense<0.000000e+00> : vector<32xf32>
    %49 = vector.multi_reduction <add>, %48, %cst_24 [1] : vector<32x32xf32> to vector<32xf32>
    %50 = vector.shape_cast %49 : vector<32xf32> to vector<32x1xf32>
    %c0_25 = arith.constant 0 : index
    %c0_26 = arith.constant 0 : index
    %51 = vector.load %arg9[%c0_25, %c0_26] : memref<1x1xf32, #tpu.memory_space<vmem>>, vector<1x1xf32>
    %52 = vector.broadcast %51 : vector<1x1xf32> to vector<32x1xf32>
    %53 = arith.addf %50, %52 : vector<32x1xf32>
    %cst_27 = arith.constant 0.000000e+00 : f32
    %54 = vector.broadcast %cst_27 : f32 to vector<32x1xf32>
    %55 = arith.cmpf ogt, %46, %54 : vector<32x1xf32>
    %cst_28 = arith.constant 0.00999999977 : f32
    %56 = vector.broadcast %cst_28 : f32 to vector<32x1xf32>
    %57 = arith.mulf %56, %46 : vector<32x1xf32>
    %58 = arith.select %55, %46, %57 : vector<32x1xi1>, vector<32x1xf32>
    %cst_29 = arith.constant 0.000000e+00 : f32
    %59 = vector.broadcast %cst_29 : f32 to vector<32x1xf32>
    %60 = arith.cmpf ogt, %53, %59 : vector<32x1xf32>
    %cst_30 = arith.constant 0.00999999977 : f32
    %61 = vector.broadcast %cst_30 : f32 to vector<32x1xf32>
    %62 = arith.mulf %61, %53 : vector<32x1xf32>
    %63 = arith.select %60, %53, %62 : vector<32x1xi1>, vector<32x1xf32>
    %64 = arith.maximumf %58, %63 : vector<32x1xf32>
    %65 = arith.subf %58, %64 : vector<32x1xf32>
    %66 = math.exp %65 : vector<32x1xf32>
    %67 = arith.subf %63, %64 : vector<32x1xf32>
    %68 = math.exp %67 : vector<32x1xf32>
    %69 = arith.addf %66, %68 : vector<32x1xf32>
    %70 = tpu.reciprocal %69 {approx = true} : vector<32x1xf32> -> vector<32x1xf32>
    %71 = arith.mulf %66, %70 : vector<32x1xf32>
    %72 = vector.broadcast %71 : vector<32x1xf32> to vector<32x32xf32>
    %73 = arith.mulf %72, %9 : vector<32x32xf32>
    %74 = arith.mulf %68, %70 : vector<32x1xf32>
    %75 = vector.broadcast %74 : vector<32x1xf32> to vector<32x32xf32>
    %76 = arith.mulf %75, %38 : vector<32x32xf32>
    %77 = arith.addf %73, %76 : vector<32x32xf32>
    %c0_31 = arith.constant 0 : index
    %c0_32 = arith.constant 0 : index
    %78 = vector.load %arg10[%c0_31, %c0_32] : memref<1x32xf32, #tpu.memory_space<vmem>>, vector<1x32xf32>
    %79 = vector.broadcast %78 : vector<1x32xf32> to vector<32x32xf32>
    %80 = arith.mulf %77, %79 : vector<32x32xf32>
    %cst_33 = arith.constant dense<0.000000e+00> : vector<32xf32>
    %81 = vector.multi_reduction <add>, %80, %cst_33 [1] : vector<32x32xf32> to vector<32xf32>
    %82 = vector.shape_cast %81 : vector<32xf32> to vector<32x1xf32>
    %c0_34 = arith.constant 0 : index
    %c0_35 = arith.constant 0 : index
    %83 = vector.load %arg11[%c0_34, %c0_35] : memref<1x32xf32, #tpu.memory_space<vmem>>, vector<1x32xf32>
    %84 = vector.broadcast %83 : vector<1x32xf32> to vector<32x32xf32>
    %85 = arith.mulf %9, %84 : vector<32x32xf32>
    %cst_36 = arith.constant dense<0.000000e+00> : vector<32xf32>
    %86 = vector.multi_reduction <add>, %85, %cst_36 [1] : vector<32x32xf32> to vector<32xf32>
    %87 = vector.shape_cast %86 : vector<32xf32> to vector<32x1xf32>
    %88 = arith.addf %82, %87 : vector<32x1xf32>
    %89 = arith.negf %88 : vector<32x1xf32>
    %90 = math.exp %89 : vector<32x1xf32>
    %cst_37 = arith.constant 1.000000e+00 : f32
    %91 = vector.broadcast %cst_37 : f32 to vector<32x1xf32>
    %92 = arith.addf %91, %90 : vector<32x1xf32>
    %93 = arith.divf %91, %92 : vector<32x1xf32>
    %94 = vector.broadcast %93 : vector<32x1xf32> to vector<32x32xf32>
    %95 = arith.mulf %94, %9 : vector<32x32xf32>
    %cst_38 = arith.constant 1.000000e+00 : f32
    %96 = vector.broadcast %cst_38 : f32 to vector<32x1xf32>
    %97 = arith.subf %96, %93 : vector<32x1xf32>
    %98 = vector.broadcast %97 : vector<32x1xf32> to vector<32x32xf32>
    %99 = arith.mulf %98, %77 : vector<32x32xf32>
    %100 = arith.addf %95, %99 : vector<32x32xf32>
    %c0_39 = arith.constant 0 : index
    %c0_40 = arith.constant 0 : index
    %101 = vector.load %arg12[%c0_39, %c0_40] : memref<1x32xf32, #tpu.memory_space<vmem>>, vector<1x32xf32>
    %c0_41 = arith.constant 0 : index
    %c0_42 = arith.constant 0 : index
    %102 = vector.load %arg13[%c0_41, %c0_42] : memref<1x32xf32, #tpu.memory_space<vmem>>, vector<1x32xf32>
    %cst_43 = arith.constant dense<0.000000e+00> : vector<32xf32>
    %103 = vector.multi_reduction <add>, %100, %cst_43 [1] : vector<32x32xf32> to vector<32xf32>
    %104 = vector.shape_cast %103 : vector<32xf32> to vector<32x1xf32>
    %cst_44 = arith.constant 3.200000e+01 : f32
    %105 = vector.broadcast %cst_44 : f32 to vector<32x1xf32>
    %106 = arith.divf %104, %105 : vector<32x1xf32>
    %107 = vector.broadcast %106 : vector<32x1xf32> to vector<32x32xf32>
    %108 = arith.subf %100, %107 : vector<32x32xf32>
    %109 = arith.mulf %108, %108 : vector<32x32xf32>
    %cst_45 = arith.constant dense<0.000000e+00> : vector<32xf32>
    %110 = vector.multi_reduction <add>, %109, %cst_45 [1] : vector<32x32xf32> to vector<32xf32>
    %111 = vector.shape_cast %110 : vector<32xf32> to vector<32x1xf32>
    %cst_46 = arith.constant 3.200000e+01 : f32
    %112 = vector.broadcast %cst_46 : f32 to vector<32x1xf32>
    %113 = arith.divf %111, %112 : vector<32x1xf32>
    %114 = vector.broadcast %106 : vector<32x1xf32> to vector<32x32xf32>
    %115 = arith.subf %100, %114 : vector<32x32xf32>
    %cst_47 = arith.constant 9.99999974E-6 : f32
    %116 = vector.broadcast %cst_47 : f32 to vector<32x1xf32>
    %117 = arith.addf %113, %116 : vector<32x1xf32>
    %118 = math.rsqrt %117 : vector<32x1xf32>
    %119 = vector.broadcast %118 : vector<32x1xf32> to vector<32x32xf32>
    %120 = arith.mulf %115, %119 : vector<32x32xf32>
    %121 = vector.broadcast %101 : vector<1x32xf32> to vector<32x32xf32>
    %122 = arith.mulf %120, %121 : vector<32x32xf32>
    %123 = vector.broadcast %102 : vector<1x32xf32> to vector<32x32xf32>
    %124 = arith.addf %122, %123 : vector<32x32xf32>
    %cst_48 = arith.constant 0.000000e+00 : f32
    %125 = vector.broadcast %cst_48 : f32 to vector<32x32xf32>
    %126 = arith.maximumf %124, %125 : vector<32x32xf32>
    %c0_49 = arith.constant 0 : index
    %c0_50 = arith.constant 0 : index
    %127 = vector.load %arg14[%c0_49, %c0_50] : memref<32x32xf32, #tpu.memory_space<vmem>>, vector<32x32xf32>
    tpu.vector_store %arg14[%c0_49, %c0_50], %126 {strides = array<i32>} : memref<32x32xf32, #tpu.memory_space<vmem>>, vector<32x32xf32>,
    return
  }
  func.func @transform_0(%arg0: i32) -> (i32, i32) {
    %c0_i32 = arith.constant 0 : i32
    %c0_i32_0 = arith.constant 0 : i32
    return %arg0, %c0_i32 : i32, i32
  }
  func.func @transform_1(%arg0: i32) -> (i32, i32) {
    %c0_i32 = arith.constant 0 : i32
    %c0_i32_0 = arith.constant 0 : i32
    return %arg0, %c0_i32 : i32, i32
  }
  func.func @transform_2(%arg0: i32) -> (i32, i32) {
    %c0_i32 = arith.constant 0 : i32
    %c0_i32_0 = arith.constant 0 : i32
    %c0_i32_1 = arith.constant 0 : i32
    return %c0_i32, %c0_i32_0 : i32, i32
  }
  func.func @transform_3(%arg0: i32) -> (i32, i32) {
    %c0_i32 = arith.constant 0 : i32
    %c0_i32_0 = arith.constant 0 : i32
    %c0_i32_1 = arith.constant 0 : i32
    return %c0_i32, %c0_i32_0 : i32, i32
  }
  func.func @transform_4(%arg0: i32) -> (i32, i32) {
    %c0_i32 = arith.constant 0 : i32
    %c0_i32_0 = arith.constant 0 : i32
    %c0_i32_1 = arith.constant 0 : i32
    return %c0_i32, %c0_i32_0 : i32, i32
  }
  func.func @transform_5(%arg0: i32) -> (i32, i32) {
    %c0_i32 = arith.constant 0 : i32
    %c0_i32_0 = arith.constant 0 : i32
    %c0_i32_1 = arith.constant 0 : i32
    return %c0_i32, %c0_i32_0 : i32, i32
  }
  func.func @transform_6(%arg0: i32) -> (i32, i32) {
    %c0_i32 = arith.constant 0 : i32
    %c0_i32_0 = arith.constant 0 : i32
    %c0_i32_1 = arith.constant 0 : i32
    return %c0_i32, %c0_i32_0 : i32, i32
  }
  func.func @transform_7(%arg0: i32) -> (i32, i32) {
    %c0_i32 = arith.constant 0 : i32
    %c0_i32_0 = arith.constant 0 : i32
    %c0_i32_1 = arith.constant 0 : i32
    return %c0_i32, %c0_i32_0 : i32, i32
  }
  func.func @transform_8(%arg0: i32) -> (i32, i32) {
    %c0_i32 = arith.constant 0 : i32
    %c0_i32_0 = arith.constant 0 : i32
    %c0_i32_1 = arith.constant 0 : i32
    return %c0_i32, %c0_i32_0 : i32, i32
  }
  func.func @transform_9(%arg0: i32) -> (i32, i32) {
    %c0_i32 = arith.constant 0 : i32
    %c0_i32_0 = arith.constant 0 : i32
    %c0_i32_1 = arith.constant 0 : i32
    return %c0_i32, %c0_i32_0 : i32, i32
  }
  func.func @transform_10(%arg0: i32) -> (i32, i32) {
    %c0_i32 = arith.constant 0 : i32
    %c0_i32_0 = arith.constant 0 : i32
    %c0_i32_1 = arith.constant 0 : i32
    return %c0_i32, %c0_i32_0 : i32, i32
  }
  func.func @transform_11(%arg0: i32) -> (i32, i32) {
    %c0_i32 = arith.constant 0 : i32
    %c0_i32_0 = arith.constant 0 : i32
    %c0_i32_1 = arith.constant 0 : i32
    return %c0_i32, %c0_i32_0 : i32, i32
  }
  func.func @transform_12(%arg0: i32) -> (i32, i32) {
    %c0_i32 = arith.constant 0 : i32
    %c0_i32_0 = arith.constant 0 : i32
    %c0_i32_1 = arith.constant 0 : i32
    return %c0_i32, %c0_i32_0 : i32, i32
  }
  func.func @transform_13(%arg0: i32) -> (i32, i32) {
    %c0_i32 = arith.constant 0 : i32
    %c0_i32_0 = arith.constant 0 : i32
    return %arg0, %c0_i32 : i32, i32
  }
}

</mosaic_0001>

<llo_original>
// kernel: atom2bond_forward.1
$region0: #{atom2bond_forward.1}
  #allocation0 [shape = 'u32[]', space=smem, size = 0x4, offset = 0x4, fixed_abs, tag = 'smem constant byte address 0x4 - core index']
  #allocation1 [shape = 'u32[144,128]{1,0:T(1,128)}', space=vmem, size = 0x12000, scoped, tag = 'internal scratch']
  #allocation2 [shape = 'f32[1,1]{1,0:T(1,128)S(1)}', space=vmem, size = 0x200, scoped, tag = 'scoped memory for atom2bond_forward.1']
  %s0 = inlined_call_operand.vmem [shape: f32[96,16], index: 0, kind: input, shape index: {}]
  %s1 = inlined_call_operand.vmem [shape: s32[96,1], index: 1, kind: input, shape index: {}]
  %s2 = inlined_call_operand.vmem [shape: f32[16,32], index: 2, kind: input, shape index: {}]
  %s3 = inlined_call_operand.vmem [shape: f32[16,32], index: 3, kind: input, shape index: {}]
  %s4 = inlined_call_operand.vmem [shape: f32[1,32], index: 4, kind: input, shape index: {}]
  %s5 = inlined_call_operand.vmem [shape: f32[1,32], index: 5, kind: input, shape index: {}]
  %s6 = inlined_call_operand.vmem [shape: f32[1,32], index: 6, kind: input, shape index: {}]
  %s7 = inlined_call_operand.vmem [shape: f32[1,32], index: 7, kind: input, shape index: {}]
  %s8 = inlined_call_operand.<no memory space> [shape: f32[1,1], index: 8, kind: input, shape index: {}]
  %s9 = inlined_call_operand.vmem [shape: f32[1,32], index: 9, kind: input, shape index: {}]
  %s10 = inlined_call_operand.vmem [shape: f32[1,32], index: 10, kind: input, shape index: {}]
  %s11 = inlined_call_operand.vmem [shape: f32[1,32], index: 11, kind: input, shape index: {}]
  %s12 = inlined_call_operand.vmem [shape: f32[1,32], index: 12, kind: input, shape index: {}]
  %s13 = inlined_call_operand.vmem [shape: f32[96,32], index: 13, kind: output, shape index: {}]
  %s14 = sld [smem:[#allocation0]]
  $region85: #{atom2bond_forward.1} parent=0
    _
  %s16 = ssub.s32 1, %s14
  %s17 = scalar_select 0, %s16, %s14
  %v18 = vstv %s8
  %19 = vst [vmem:[#allocation2] sm:$0x1] %v18
  loop: start=0, step=1, limit=5
  $region2: #{atom2bond_forward.1} parent=0 // loop_pre_header
    _
  $region3: #{atom2bond_forward.1} parent=0 // loop_header
    %s21 = sphi 0, %s25
    %p22 = scmp.ge.s32.totalorder %s21, 5
    %s31 = sphi 0, %s33
    %s34 = sphi 0, %s31
    %s35 = sphi 0, %s34
    %s51 = sphi 0, %s35
    %s57 = sphi 0, %s59
    %s60 = sphi 0, %s57
    %s61 = sphi 0, %s60
    %s77 = sphi 0, %s61
    %s81 = sphi 0, %s81
    %s83 = sphi 0, %s81
    %s84 = sphi 0, %s83
    %s98 = sphi 0, %s84
    %s102 = sphi 0, %s102
    %s104 = sphi 0, %s102
    %s105 = sphi 0, %s104
    %s119 = sphi 0, %s105
    %s123 = sphi 0, %s123
    %s125 = sphi 0, %s123
    %s126 = sphi 0, %s125
    %s140 = sphi 0, %s126
    %s144 = sphi 0, %s144
    %s146 = sphi 0, %s144
    %s147 = sphi 0, %s146
    %s161 = sphi 0, %s147
    %s165 = sphi 0, %s165
    %s167 = sphi 0, %s165
    %s168 = sphi 0, %s167
    %s182 = sphi 0, %s168
    %s186 = sphi 0, %s186
    %s188 = sphi 0, %s186
    %s189 = sphi 0, %s188
    %s203 = sphi 0, %s189
    %s207 = sphi 0, %s207
    %s209 = sphi 0, %s207
    %s210 = sphi 0, %s209
    %s224 = sphi 0, %s210
    %s228 = sphi 0, %s228
    %s230 = sphi 0, %s228
    %s231 = sphi 0, %s230
    %s245 = sphi 0, %s231
    %s249 = sphi 0, %s249
    %s251 = sphi 0, %s249
    %s252 = sphi 0, %s251
    %s266 = sphi 0, %s252
    %s270 = sphi 0, %s270
    %s272 = sphi 0, %s270
    %s273 = sphi 0, %s272
    %s287 = sphi 0, %s273
    %s291 = sphi 0, %s291
    %s293 = sphi 0, %s291
    %s294 = sphi 0, %s293
    %s308 = sphi 0, %s294
    %s314 = sphi 0, %s316
    %s317 = sphi 0, %s314
    %s318 = sphi 0, %s317
    %s334 = sphi 0, %s318
  $region4: #{atom2bond_forward.1} parent=0 // loop_header_branch
    %24 = sbr.rel (%p22) target = $region8
  $region5: #{atom2bond_forward.1} parent=0 // loop_body
    %s26 = ssub.s32 %s21, 1
    %s27 = ssub.s32 %s21, 2
    %s28 = sadd.s32 %s21, 1
    %s29 = ssub.s32 %s21, %s28
    %p30 = scmp.eq.s32.totalorder %s29, 0
    %s32 = sadd.s32 %s31, 1
    %s33 = scalar_select %p30, %s31, %s32
    %p36 = pneg %p30
    %p37 = scmp.eq.s32.totalorder %s21, 2
    %p38 = por %p36, %p37
    %p39 = scmp.ne.s32.totalorder %s31, %s34
    %p40 = scmp.eq.s32.totalorder %s21, 0
    %p41 = por %p39, %p40
    %p42 = scmp.ne.s32.totalorder %s31, %s34
    %p43 = scmp.eq.s32.totalorder %s26, 2
    %p44 = por %p42, %p43
    %p45 = scmp.ne.s32.totalorder %s34, %s35
    %p46 = scmp.eq.s32.totalorder %s26, 0
    %p47 = por %p45, %p46
    %p48 = scmp.ne.s32.totalorder %s34, %s35
    %p49 = scmp.eq.s32.totalorder %s27, 2
    %p50 = por %p48, %p49
    %p52 = scmp.ne.s32.totalorder %s35, %s51
    %p53 = scmp.eq.s32.totalorder %s27, 0
    %p54 = por %p52, %p53
    %s55 = ssub.s32 %s21, %s28
    %p56 = scmp.eq.s32.totalorder %s55, 0
    %s58 = sadd.s32 %s57, 1
    %s59 = scalar_select %p56, %s57, %s58
    %p62 = pneg %p56
    %p63 = scmp.eq.s32.totalorder %s21, 2
    %p64 = por %p62, %p63
    %p65 = scmp.ne.s32.totalorder %s57, %s60
    %p66 = scmp.eq.s32.totalorder %s21, 0
    %p67 = por %p65, %p66
    %p68 = scmp.ne.s32.totalorder %s57, %s60
    %p69 = scmp.eq.s32.totalorder %s26, 2
    %p70 = por %p68, %p69
    %p71 = scmp.ne.s32.totalorder %s60, %s61
    %p72 = scmp.eq.s32.totalorder %s26, 0
    %p73 = por %p71, %p72
    %p74 = scmp.ne.s32.totalorder %s60, %s61
    %p75 = scmp.eq.s32.totalorder %s27, 2
    %p76 = por %p74, %p75
    %p78 = scmp.ne.s32.totalorder %s61, %s77
    %p79 = scmp.eq.s32.totalorder %s27, 0
    %p80 = por %p78, %p79
    %s82 = sadd.s32 %s81, 1
    %p85 = scmp.eq.s32.totalorder %s21, 2
    %p86 = scmp.ne.s32.totalorder %s81, %s83
    %p87 = scmp.eq.s32.totalorder %s21, 0
    %p88 = por %p86, %p87
    %p89 = scmp.ne.s32.totalorder %s81, %s83
    %p90 = scmp.eq.s32.totalorder %s26, 2
    %p91 = por %p89, %p90
    %p92 = scmp.ne.s32.totalorder %s83, %s84
    %p93 = scmp.eq.s32.totalorder %s26, 0
    %p94 = por %p92, %p93
    %p95 = scmp.ne.s32.totalorder %s83, %s84
    %p96 = scmp.eq.s32.totalorder %s27, 2
    %p97 = por %p95, %p96
    %p99 = scmp.ne.s32.totalorder %s84, %s98
    %p100 = scmp.eq.s32.totalorder %s27, 0
    %p101 = por %p99, %p100
    %s103 = sadd.s32 %s102, 1
    %p106 = scmp.eq.s32.totalorder %s21, 2
    %p107 = scmp.ne.s32.totalorder %s102, %s104
    %p108 = scmp.eq.s32.totalorder %s21, 0
    %p109 = por %p107, %p108
    %p110 = scmp.ne.s32.totalorder %s102, %s104
    %p111 = scmp.eq.s32.totalorder %s26, 2
    %p112 = por %p110, %p111
    %p113 = scmp.ne.s32.totalorder %s104, %s105
    %p114 = scmp.eq.s32.totalorder %s26, 0
    %p115 = por %p113, %p114
    %p116 = scmp.ne.s32.totalorder %s104, %s105
    %p117 = scmp.eq.s32.totalorder %s27, 2
    %p118 = por %p116, %p117
    %p120 = scmp.ne.s32.totalorder %s105, %s119
    %p121 = scmp.eq.s32.totalorder %s27, 0
    %p122 = por %p120, %p121
    %s124 = sadd.s32 %s123, 1
    %p127 = scmp.eq.s32.totalorder %s21, 2
    %p128 = scmp.ne.s32.totalorder %s123, %s125
    %p129 = scmp.eq.s32.totalorder %s21, 0
    %p130 = por %p128, %p129
    %p131 = scmp.ne.s32.totalorder %s123, %s125
    %p132 = scmp.eq.s32.totalorder %s26, 2
    %p133 = por %p131, %p132
    %p134 = scmp.ne.s32.totalorder %s125, %s126
    %p135 = scmp.eq.s32.totalorder %s26, 0
    %p136 = por %p134, %p135
    %p137 = scmp.ne.s32.totalorder %s125, %s126
    %p138 = scmp.eq.s32.totalorder %s27, 2
    %p139 = por %p137, %p138
    %p141 = scmp.ne.s32.totalorder %s126, %s140
    %p142 = scmp.eq.s32.totalorder %s27, 0
    %p143 = por %p141, %p142
    %s145 = sadd.s32 %s144, 1
    %p148 = scmp.eq.s32.totalorder %s21, 2
    %p149 = scmp.ne.s32.totalorder %s144, %s146
    %p150 = scmp.eq.s32.totalorder %s21, 0
    %p151 = por %p149, %p150
    %p152 = scmp.ne.s32.totalorder %s144, %s146
    %p153 = scmp.eq.s32.totalorder %s26, 2
    %p154 = por %p152, %p153
    %p155 = scmp.ne.s32.totalorder %s146, %s147
    %p156 = scmp.eq.s32.totalorder %s26, 0
    %p157 = por %p155, %p156
    %p158 = scmp.ne.s32.totalorder %s146, %s147
    %p159 = scmp.eq.s32.totalorder %s27, 2
    %p160 = por %p158, %p159
    %p162 = scmp.ne.s32.totalorder %s147, %s161
    %p163 = scmp.eq.s32.totalorder %s27, 0
    %p164 = por %p162, %p163
    %s166 = sadd.s32 %s165, 1
    %p169 = scmp.eq.s32.totalorder %s21, 2
    %p170 = scmp.ne.s32.totalorder %s165, %s167
    %p171 = scmp.eq.s32.totalorder %s21, 0
    %p172 = por %p170, %p171
    %p173 = scmp.ne.s32.totalorder %s165, %s167
    %p174 = scmp.eq.s32.totalorder %s26, 2
    %p175 = por %p173, %p174
    %p176 = scmp.ne.s32.totalorder %s167, %s168
    %p177 = scmp.eq.s32.totalorder %s26, 0
    %p178 = por %p176, %p177
    %p179 = scmp.ne.s32.totalorder %s167, %s168
    %p180 = scmp.eq.s32.totalorder %s27, 2
    %p181 = por %p179, %p180
    %p183 = scmp.ne.s32.totalorder %s168, %s182
    %p184 = scmp.eq.s32.totalorder %s27, 0
    %p185 = por %p183, %p184
    %s187 = sadd.s32 %s186, 1
    %p190 = scmp.eq.s32.totalorder %s21, 2
    %p191 = scmp.ne.s32.totalorder %s186, %s188
    %p192 = scmp.eq.s32.totalorder %s21, 0
    %p193 = por %p191, %p192
    %p194 = scmp.ne.s32.totalorder %s186, %s188
    %p195 = scmp.eq.s32.totalorder %s26, 2
    %p196 = por %p194, %p195
    %p197 = scmp.ne.s32.totalorder %s188, %s189
    %p198 = scmp.eq.s32.totalorder %s26, 0
    %p199 = por %p197, %p198
    %p200 = scmp.ne.s32.totalorder %s188, %s189
    %p201 = scmp.eq.s32.totalorder %s27, 2
    %p202 = por %p200, %p201
    %p204 = scmp.ne.s32.totalorder %s189, %s203
    %p205 = scmp.eq.s32.totalorder %s27, 0
    %p206 = por %p204, %p205
    %s208 = sadd.s32 %s207, 1
    %p211 = scmp.eq.s32.totalorder %s21, 2
    %p212 = scmp.ne.s32.totalorder %s207, %s209
    %p213 = scmp.eq.s32.totalorder %s21, 0
    %p214 = por %p212, %p213
    %p215 = scmp.ne.s32.totalorder %s207, %s209
    %p216 = scmp.eq.s32.totalorder %s26, 2
    %p217 = por %p215, %p216
    %p218 = scmp.ne.s32.totalorder %s209, %s210
    %p219 = scmp.eq.s32.totalorder %s26, 0
    %p220 = por %p218, %p219
    %p221 = scmp.ne.s32.totalorder %s209, %s210
    %p222 = scmp.eq.s32.totalorder %s27, 2
    %p223 = por %p221, %p222
    %p225 = scmp.ne.s32.totalorder %s210, %s224
    %p226 = scmp.eq.s32.totalorder %s27, 0
    %p227 = por %p225, %p226
    %s229 = sadd.s32 %s228, 1
    %p232 = scmp.eq.s32.totalorder %s21, 2
    %p233 = scmp.ne.s32.totalorder %s228, %s230
    %p234 = scmp.eq.s32.totalorder %s21, 0
    %p235 = por %p233, %p234
    %p236 = scmp.ne.s32.totalorder %s228, %s230
    %p237 = scmp.eq.s32.totalorder %s26, 2
    %p238 = por %p236, %p237
    %p239 = scmp.ne.s32.totalorder %s230, %s231
    %p240 = scmp.eq.s32.totalorder %s26, 0
    %p241 = por %p239, %p240
    %p242 = scmp.ne.s32.totalorder %s230, %s231
    %p243 = scmp.eq.s32.totalorder %s27, 2
    %p244 = por %p242, %p243
    %p246 = scmp.ne.s32.totalorder %s231, %s245
    %p247 = scmp.eq.s32.totalorder %s27, 0
    %p248 = por %p246, %p247
    %s250 = sadd.s32 %s249, 1
    %p253 = scmp.eq.s32.totalorder %s21, 2
    %p254 = scmp.ne.s32.totalorder %s249, %s251
    %p255 = scmp.eq.s32.totalorder %s21, 0
    %p256 = por %p254, %p255
    %p257 = scmp.ne.s32.totalorder %s249, %s251
    %p258 = scmp.eq.s32.totalorder %s26, 2
    %p259 = por %p257, %p258
    %p260 = scmp.ne.s32.totalorder %s251, %s252
    %p261 = scmp.eq.s32.totalorder %s26, 0
    %p262 = por %p260, %p261
    %p263 = scmp.ne.s32.totalorder %s251, %s252
    %p264 = scmp.eq.s32.totalorder %s27, 2
    %p265 = por %p263, %p264
    %p267 = scmp.ne.s32.totalorder %s252, %s266
    %p268 = scmp.eq.s32.totalorder %s27, 0
    %p269 = por %p267, %p268
    %s271 = sadd.s32 %s270, 1
    %p274 = scmp.eq.s32.totalorder %s21, 2
    %p275 = scmp.ne.s32.totalorder %s270, %s272
    %p276 = scmp.eq.s32.totalorder %s21, 0
    %p277 = por %p275, %p276
    %p278 = scmp.ne.s32.totalorder %s270, %s272
    %p279 = scmp.eq.s32.totalorder %s26, 2
    %p280 = por %p278, %p279
    %p281 = scmp.ne.s32.totalorder %s272, %s273
    %p282 = scmp.eq.s32.totalorder %s26, 0
    %p283 = por %p281, %p282
    %p284 = scmp.ne.s32.totalorder %s272, %s273
    %p285 = scmp.eq.s32.totalorder %s27, 2
    %p286 = por %p284, %p285
    %p288 = scmp.ne.s32.totalorder %s273, %s287
    %p289 = scmp.eq.s32.totalorder %s27, 0
    %p290 = por %p288, %p289
    %s292 = sadd.s32 %s291, 1
    %p295 = scmp.eq.s32.totalorder %s21, 2
    %p296 = scmp.ne.s32.totalorder %s291, %s293
    %p297 = scmp.eq.s32.totalorder %s21, 0
    %p298 = por %p296, %p297
    %p299 = scmp.ne.s32.totalorder %s291, %s293
    %p300 = scmp.eq.s32.totalorder %s26, 2
    %p301 = por %p299, %p300
    %p302 = scmp.ne.s32.totalorder %s293, %s294
    %p303 = scmp.eq.s32.totalorder %s26, 0
    %p304 = por %p302, %p303
    %p305 = scmp.ne.s32.totalorder %s293, %s294
    %p306 = scmp.eq.s32.totalorder %s27, 2
    %p307 = por %p305, %p306
    %p309 = scmp.ne.s32.totalorder %s294, %s308
    %p310 = scmp.eq.s32.totalorder %s27, 0
    %p311 = por %p309, %p310
    %s312 = ssub.s32 %s21, %s28
    %p313 = scmp.eq.s32.totalorder %s312, 0
    %s315 = sadd.s32 %s314, 1
    %s316 = scalar_select %p313, %s314, %s315
    %p319 = pneg %p313
    %p320 = scmp.eq.s32.totalorder %s21, 2
    %p321 = por %p319, %p320
    %p322 = scmp.ne.s32.totalorder %s314, %s317
    %p323 = scmp.eq.s32.totalorder %s21, 0
    %p324 = por %p322, %p323
    %p325 = scmp.ne.s32.totalorder %s314, %s317
    %p326 = scmp.eq.s32.totalorder %s26, 2
    %p327 = por %p325, %p326
    %p328 = scmp.ne.s32.totalorder %s317, %s318
    %p329 = scmp.eq.s32.totalorder %s26, 0
    %p330 = por %p328, %p329
    %p331 = scmp.ne.s32.totalorder %s317, %s318
    %p332 = scmp.eq.s32.totalorder %s27, 2
    %p333 = por %p331, %p332
    %p335 = scmp.ne.s32.totalorder %s318, %s334
    %p336 = scmp.eq.s32.totalorder %s27, 0
    %p337 = por %p335, %p336
    %p338 = scmp.le.s32.totalorder 1, %s21
    %p339 = scmp.lt.s32.totalorder %s21, 4
    %p340 = pnand %p338, %p339
    %p341 = pneg %p340
    // Predicated region
    $region9: #{atom2bond_forward.1} parent=5 // pred_check
      _
    $region10: #{atom2bond_forward.1} parent=5 // pred_check_branch
      %343 = sbr.rel (%p340) target = $region12
    $region11: #{atom2bond_forward.1} parent=5 // pred_region
      %s344 = ssub.s32 %s21, 1
      // Predicated region
      $region13: #{atom2bond_forward.1} parent=11 // pred_check
        %p345 = pneg %p94
      $region14: #{atom2bond_forward.1} parent=11 // pred_check_branch
        %347 = sbr.rel (%p345) target = $region16
      $region15: #{atom2bond_forward.1} parent=11 // pred_region
        _
      $region16: #{atom2bond_forward.1} parent=11 // pred_fallthru
        _
      // Predicated region
      $region17: #{atom2bond_forward.1} parent=11 // pred_check
        %p348 = pneg %p115
      $region18: #{atom2bond_forward.1} parent=11 // pred_check_branch
        %350 = sbr.rel (%p348) target = $region20
      $region19: #{atom2bond_forward.1} parent=11 // pred_region
        _
      $region20: #{atom2bond_forward.1} parent=11 // pred_fallthru
        _
      // Predicated region
      $region21: #{atom2bond_forward.1} parent=11 // pred_check
        %p351 = pneg %p136
      $region22: #{atom2bond_forward.1} parent=11 // pred_check_branch
        %353 = sbr.rel (%p351) target = $region24
      $region23: #{atom2bond_forward.1} parent=11 // pred_region
        _
      $region24: #{atom2bond_forward.1} parent=11 // pred_fallthru
        _
      // Predicated region
      $region25: #{atom2bond_forward.1} parent=11 // pred_check
        %p354 = pneg %p157
      $region26: #{atom2bond_forward.1} parent=11 // pred_check_branch
        %356 = sbr.rel (%p354) target = $region28
      $region27: #{atom2bond_forward.1} parent=11 // pred_region
        _
      $region28: #{atom2bond_forward.1} parent=11 // pred_fallthru
        _
      // Predicated region
      $region29: #{atom2bond_forward.1} parent=11 // pred_check
        %p357 = pneg %p178
      $region30: #{atom2bond_forward.1} parent=11 // pred_check_branch
        %359 = sbr.rel (%p357) target = $region32
      $region31: #{atom2bond_forward.1} parent=11 // pred_region
        _
      $region32: #{atom2bond_forward.1} parent=11 // pred_fallthru
        _
      // Predicated region
      $region33: #{atom2bond_forward.1} parent=11 // pred_check
        %p360 = pneg %p199
      $region34: #{atom2bond_forward.1} parent=11 // pred_check_branch
        %362 = sbr.rel (%p360) target = $region36
      $region35: #{atom2bond_forward.1} parent=11 // pred_region
        _
      $region36: #{atom2bond_forward.1} parent=11 // pred_fallthru
        _
      // Predicated region
      $region37: #{atom2bond_forward.1} parent=11 // pred_check
        %p363 = pneg %p220
      $region38: #{atom2bond_forward.1} parent=11 // pred_check_branch
        %365 = sbr.rel (%p363) target = $region40
      $region39: #{atom2bond_forward.1} parent=11 // pred_region
        _
      $region40: #{atom2bond_forward.1} parent=11 // pred_fallthru
        _
      // Predicated region
      $region41: #{atom2bond_forward.1} parent=11 // pred_check
        %p366 = pneg %p241
      $region42: #{atom2bond_forward.1} parent=11 // pred_check_branch
        %368 = sbr.rel (%p366) target = $region44
      $region43: #{atom2bond_forward.1} parent=11 // pred_region
        _
      $region44: #{atom2bond_forward.1} parent=11 // pred_fallthru
        _
      // Predicated region
      $region45: #{atom2bond_forward.1} parent=11 // pred_check
        %p369 = pneg %p262
      $region46: #{atom2bond_forward.1} parent=11 // pred_check_branch
        %371 = sbr.rel (%p369) target = $region48
      $region47: #{atom2bond_forward.1} parent=11 // pred_region
        _
      $region48: #{atom2bond_forward.1} parent=11 // pred_fallthru
        _
      // Predicated region
      $region49: #{atom2bond_forward.1} parent=11 // pred_check
        %p372 = pneg %p283
      $region50: #{atom2bond_forward.1} parent=11 // pred_check_branch
        %374 = sbr.rel (%p372) target = $region52
      $region51: #{atom2bond_forward.1} parent=11 // pred_region
        _
      $region52: #{atom2bond_forward.1} parent=11 // pred_fallthru
        _
      // Predicated region
      $region53: #{atom2bond_forward.1} parent=11 // pred_check
        %p375 = pneg %p304
      $region54: #{atom2bond_forward.1} parent=11 // pred_check_branch
        %377 = sbr.rel (%p375) target = $region56
      $region55: #{atom2bond_forward.1} parent=11 // pred_region
        _
      $region56: #{atom2bond_forward.1} parent=11 // pred_fallthru
        _
    $region12: #{atom2bond_forward.1} parent=5 // pred_fallthru
      _
    %p378 = scmp.lt.s32.totalorder %s21, 3
    // Predicated region
    $region57: #{atom2bond_forward.1} parent=5 // pred_check
      %p379 = pneg %p378
    $region58: #{atom2bond_forward.1} parent=5 // pred_check_branch
      %381 = sbr.rel (%p379) target = $region60
    $region59: #{atom2bond_forward.1} parent=5 // pred_region
      // Predicated region
      $region61: #{atom2bond_forward.1} parent=59 // pred_check
        %p382 = pneg %p41
      $region62: #{atom2bond_forward.1} parent=59 // pred_check_branch
        %384 = sbr.rel (%p382) target = $region64
      $region63: #{atom2bond_forward.1} parent=59 // pred_region
        %s385 = smul.u32 4, %s21
        %p386 = scmp.lt.s32.totalorder %s385, 11
        %s387 = scalar_select %p386, %s385, 11
        %s388 = smul.addr %s387, 8
        %s389 = scalar_lea.vmem %s0, %s388
        %s390 = smul.u32 4, %s21
      $region64: #{atom2bond_forward.1} parent=59 // pred_fallthru
        _
      // Predicated region
      $region65: #{atom2bond_forward.1} parent=59 // pred_check
        %p391 = pneg %p67
      $region66: #{atom2bond_forward.1} parent=59 // pred_check_branch
        %393 = sbr.rel (%p391) target = $region68
      $region67: #{atom2bond_forward.1} parent=59 // pred_region
        %s394 = smul.u32 4, %s21
        %p395 = scmp.lt.s32.totalorder %s394, 11
        %s396 = scalar_select %p395, %s394, 11
        %s397 = smul.addr %s396, 8
        %s398 = scalar_lea.vmem %s1, %s397
        %s399 = smul.u32 4, %s21
      $region68: #{atom2bond_forward.1} parent=59 // pred_fallthru
        _
    $region60: #{atom2bond_forward.1} parent=5 // pred_fallthru
      _
    %p400 = scmp.le.s32.totalorder 1, %s21
    %p401 = scmp.lt.s32.totalorder %s21, 4
    %p402 = pnand %p400, %p401
    %p403 = pneg %p402
    // Predicated region
    $region69: #{atom2bond_forward.1} parent=5 // pred_check
      _
    $region70: #{atom2bond_forward.1} parent=5 // pred_check_branch
      %405 = sbr.rel (%p402) target = $region72
    $region71: #{atom2bond_forward.1} parent=5 // pred_region
      %s406 = ssub.s32 %s21, 1
      %s407 = smul.u32 4, %s26
      %p408 = scmp.lt.s32.totalorder %s407, 11
      %s409 = scalar_select %p408, %s407, 11
      %s410 = smul.addr %s409, 8
      %s411 = scalar_lea.vmem %s0, %s410
      %p412 = pneg %p47
      %p413 = pneg %p44
      %s414 = smul.u32 4, %s26
      %p415 = scmp.lt.s32.totalorder %s414, 11
      %s416 = scalar_select %p415, %s414, 11
      %s417 = smul.addr %s416, 8
      %s418 = scalar_lea.vmem %s1, %s417
      %p419 = pneg %p73
      %p420 = pneg %p70
      %p421 = pneg %p94
      %p422 = pneg %p91
      %p423 = pneg %p115
      %p424 = pneg %p112
      %p425 = pneg %p136
      %p426 = pneg %p133
      %p427 = pneg %p157
      %p428 = pneg %p154
      %p429 = pneg %p178
      %p430 = pneg %p175
      %p431 = pneg %p199
      %p432 = pneg %p196
      %p433 = pneg %p220
      %p434 = pneg %p217
      %p435 = pneg %p241
      %p436 = pneg %p238
      %p437 = pneg %p262
      %p438 = pneg %p259
      %p439 = pneg %p283
      %p440 = pneg %p280
      %p441 = pneg %p304
      %p442 = pneg %p301
      %p443 = pneg %p330
      %p444 = pneg %p327
      %s445 = smul.u32 4, %s26
      %p446 = scmp.lt.s32.totalorder %s445, 11
      %s447 = scalar_select %p446, %s445, 11
      %s448 = smul.addr %s447, 8
      %s449 = scalar_lea.vmem %s13, %s448
      %s450 = smul.u32 4, %s26
      %p451 = scmp.lt.s32.totalorder %s450, 11
      %s452 = scalar_select %p451, %s450, 11
      %s453 = smul.addr %s452, 8
      %s454 = scalar_lea.vmem %s0, %s453
      %s455 = smul.u32 4, %s26
      %s456 = smul.u32 4, %s26
      %p457 = scmp.lt.s32.totalorder %s456, 11
      %s458 = scalar_select %p457, %s456, 11
      %s459 = smul.addr %s458, 8
      %s460 = scalar_lea.vmem %s1, %s459
      %s461 = smul.u32 4, %s26
      %s462 = smul.u32 4, %s26
      %p463 = scmp.lt.s32.totalorder %s462, 11
      %s464 = scalar_select %p463, %s462, 11
      %s465 = smul.addr %s464, 8
      %s466 = scalar_lea.vmem %s13, %s465
      %s467 = smul.u32 4, %s26
      %v468 = vld [vmem:[%s454] sm:$0xff]
      %v469 = vld [vmem:[%s454 + $0x8] sm:$0xff]
      %v470 = vld [vmem:[%s454 + $0x10] sm:$0xff]
      %v471 = vld [vmem:[%s454 + $0x18] sm:$0xff]
      %v472 = vld [vmem:[%s2] sm:$0xff]
      %v473 = vld [vmem:[%s2 + $0x8] sm:$0xff]
      %v474 = vld [vmem:[%s460] sm:$0xff]
      %v475 = vld [vmem:[%s460 + $0x8] sm:$0xff]
      %v476 = vld [vmem:[%s460 + $0x10] sm:$0xff]
      %v477 = vld [vmem:[%s460 + $0x18] sm:$0xff]
      %v478 = vlaneseq
      %v479 = vand.u32 %v478, 127
      %480 = vset.pattern.permute.xlu0 0
      %481 = vperm.xlu0 %480, %v474
      %v482 = vpop.permute.xlu0 %481
      %483 = vset.pattern.permute.xlu0 0
      %484 = vperm.xlu0 %483, %v475
      %v485 = vpop.permute.xlu0 %484
      %486 = vset.pattern.permute.xlu0 0
      %487 = vperm.xlu0 %486, %v476
      %v488 = vpop.permute.xlu0 %487
      %489 = vset.pattern.permute.xlu0 0
      %490 = vperm.xlu0 %489, %v477
      %v491 = vpop.permute.xlu0 %490
      %vm492 = vcmp.eq.s32.totalorder %v482, %v479
      %vm493 = vcmp.eq.s32.totalorder %v485, %v479
      %vm494 = vcmp.eq.s32.totalorder %v488, %v479
      %vm495 = vcmp.eq.s32.totalorder %v491, %v479
      %v496 = vsel %vm492, 1, 0
      %v497 = vsel %vm493, 1, 0
      %v498 = vsel %vm494, 1, 0
      %v499 = vsel %vm495, 1, 0
      %v500 = vcvt.s32.f32 %v496
      %v501 = vcvt.s32.f32 %v497
      %v502 = vcvt.s32.f32 %v498
      %v503 = vcvt.s32.f32 %v499
      %vm504 = vcmask 130048
      %v506 = vsel %vm504, %v500, 0
      %v509 = vsel %vm504, %v501, 0
      %v512 = vsel %vm504, %v502, 0
      %v515 = vsel %vm504, %v503, 0
      %517 = vmatprep.subr.mxu0 0.0
      %v518 = vand.u32 %v472, 4294901760
      %519 = vmatpush1.msra.mxu0 %v518
      %520 = vmatprep.subr.mxu0 0.0
      %v521 = vand.u32 %v473, 4294901760
      %522 = vmatpush1.msra.mxu0 %v521
      %523 = vmatprep.subr.mxu0 0.0
      %524 = vmatpush1.msra.mxu0 0.0
      %525 = vmatprep.subr.mxu0 0.0
      %526 = vmatpush1.msra.mxu0 0.0
      %527 = vmatprep.subr.mxu0 0.0
      %528 = vmatpush1.msra.mxu0 0.0
      %529 = vmatprep.subr.mxu0 0.0
      %530 = vmatpush1.msra.mxu0 0.0
      %531 = vmatprep.subr.mxu0 0.0
      %532 = vmatpush1.msra.mxu0 0.0
      %533 = vmatprep.subr.mxu0 0.0
      %534 = vmatpush1.msra.mxu0 0.0
      %535 = vmatprep.subr.mxu0 0.0
      %536 = vmatpush1.msra.mxu0 0.0
      %537 = vmatprep.subr.mxu0 0.0
      %538 = vmatpush1.msra.mxu0 0.0
      %539 = vmatprep.subr.mxu0 0.0
      %540 = vmatpush1.msra.mxu0 0.0
      %541 = vmatprep.subr.mxu0 0.0
      %542 = vmatpush1.msra.mxu0 0.0
      %543 = vmatprep.subr.mxu0 0.0
      %544 = vmatpush1.msra.mxu0 0.0
      %545 = vmatprep.subr.mxu0 0.0
      %546 = vmatpush1.msra.mxu0 0.0
      %547 = vmatprep.subr.mxu0 0.0
      %548 = vmatpush1.msra.mxu0 0.0
      %549 = vmatprep.subr.mxu0 0.0
      %550 = vmatpush1.msra.mxu0 0.0
      %551 = vmatprep.subr.mxu0 0.0
      %552 = vmatpush1.msra.mxu0 0.0
      %553 = vmatprep.subr.mxu0 0.0
      %554 = vmatpush1.msra.mxu0 0.0
      %555 = vmatprep.subr.mxu0 0.0
      %556 = vmatpush1.msra.mxu0 0.0
      %557 = vmatprep.subr.mxu0 0.0
      %558 = vmatpush1.msra.mxu0 0.0
      %559 = vmatprep.subr.mxu0 0.0
      %560 = vmatpush1.msra.mxu0 0.0
      %561 = vmatprep.subr.mxu0 0.0
      %562 = vmatpush1.msra.mxu0 0.0
      %563 = vmatprep.subr.mxu0 0.0
      %564 = vmatpush1.msra.mxu0 0.0
      %565 = vmatprep.subr.mxu0 0.0
      %566 = vmatpush1.msra.mxu0 0.0
      %567 = vmatprep.subr.mxu0 0.0
      %568 = vmatpush1.msra.mxu0 0.0
      %569 = vmatprep.subr.mxu0 0.0
      %570 = vmatpush1.msra.mxu0 0.0
      %571 = vmatprep.subr.mxu0 0.0
      %572 = vmatpush1.msra.mxu0 0.0
      %573 = vmatprep.subr.mxu0 0.0
      %574 = vmatpush1.msra.mxu0 0.0
      %575 = vmatprep.subr.mxu0 0.0
      %576 = vmatpush1.msra.mxu0 0.0
      %577 = vmatprep.subr.mxu0 0.0
      %578 = vmatpush1.msra.mxu0 0.0
      %579 = vmatprep.subr.mxu0 0.0
      %580 = vmatpush1.msra.mxu0 0.0
      %581 = vmatprep.subr.mxu0 0.0
      %582 = vmatpush1.msra.mxu0 0.0
      %583 = vmatprep.mubr.f32.mxu0 0.0
      %v584 = vand.u32 %v506, 4294901760
      %v585 = vsub.f32 %v506, %v584
      %v586 = vand.u32 %v585, 4294901760
      %v587 = vsub.f32 %v585, %v586
      %v588 = vand.u32 %v587, 4294901760
      %589 = vmatmul.mubr.f32.gmra.mrb[0].mxu0 %v588
      %v590 = vpop.f32.mrb[0].mxu0
      %v591 = vadd.f32 0.0, %v590
      %v592 = vpop.f32.mrb[0].mxu0
      %593 = vmatprep.mubr.f32.mxu0 0.0
      %v594 = vand.u32 %v509, 4294901760
      %v595 = vsub.f32 %v509, %v594
      %v596 = vand.u32 %v595, 4294901760
      %v597 = vsub.f32 %v595, %v596
      %v598 = vand.u32 %v597, 4294901760
      %599 = vmatmul.mubr.f32.gmra.mrb[0].mxu0 %v598
      %v600 = vpop.f32.mrb[0].mxu0
      %v601 = vadd.f32 0.0, %v600
      %v602 = vpop.f32.mrb[0].mxu0
      %603 = vmatprep.mubr.f32.mxu0 0.0
      %v604 = vand.u32 %v512, 4294901760
      %v605 = vsub.f32 %v512, %v604
      %v606 = vand.u32 %v605, 4294901760
      %v607 = vsub.f32 %v605, %v606
      %v608 = vand.u32 %v607, 4294901760
      %609 = vmatmul.mubr.f32.gmra.mrb[0].mxu0 %v608
      %v610 = vpop.f32.mrb[0].mxu0
      %v611 = vadd.f32 0.0, %v610
      %v612 = vpop.f32.mrb[0].mxu0
      %613 = vmatprep.mubr.f32.mxu0 0.0
      %v614 = vand.u32 %v515, 4294901760
      %v615 = vsub.f32 %v515, %v614
      %v616 = vand.u32 %v615, 4294901760
      %v617 = vsub.f32 %v615, %v616
      %v618 = vand.u32 %v617, 4294901760
      %619 = vmatmul.mubr.f32.gmra.mrb[0].mxu0 %v618
      %v620 = vpop.f32.mrb[0].mxu0
      %v621 = vadd.f32 0.0, %v620
      %v622 = vpop.f32.mrb[0].mxu0
      %623 = vdwg.mxu0
      %624 = vmatprep.subr.mxu0 0.0
      %v625 = vand.u32 %v472, 4294901760
      %v626 = vsub.f32 %v472, %v625
      %v627 = vand.u32 %v626, 4294901760
      %v628 = vsub.f32 %v626, %v627
      %v629 = vand.u32 %v628, 4294901760
      %630 = vmatpush1.msra.mxu0 %v629
      %631 = vmatprep.subr.mxu0 0.0
      %v632 = vand.u32 %v473, 4294901760
      %v633 = vsub.f32 %v473, %v632
      %v634 = vand.u32 %v633, 4294901760
      %v635 = vsub.f32 %v633, %v634
      %v636 = vand.u32 %v635, 4294901760
      %637 = vmatpush1.msra.mxu0 %v636
      %638 = vmatprep.subr.mxu0 0.0
      %639 = vmatpush1.msra.mxu0 0.0
      %640 = vmatprep.subr.mxu0 0.0
      %641 = vmatpush1.msra.mxu0 0.0
      %642 = vmatprep.subr.mxu0 0.0
      %643 = vmatpush1.msra.mxu0 0.0
      %644 = vmatprep.subr.mxu0 0.0
      %645 = vmatpush1.msra.mxu0 0.0
      %646 = vmatprep.subr.mxu0 0.0
      %647 = vmatpush1.msra.mxu0 0.0
      %648 = vmatprep.subr.mxu0 0.0
      %649 = vmatpush1.msra.mxu0 0.0
      %650 = vmatprep.subr.mxu0 0.0
      %651 = vmatpush1.msra.mxu0 0.0
      %652 = vmatprep.subr.mxu0 0.0
      %653 = vmatpush1.msra.mxu0 0.0
      %654 = vmatprep.subr.mxu0 0.0
      %655 = vmatpush1.msra.mxu0 0.0
      %656 = vmatprep.subr.mxu0 0.0
      %657 = vmatpush1.msra.mxu0 0.0
      %658 = vmatprep.subr.mxu0 0.0
      %659 = vmatpush1.msra.mxu0 0.0
      %660 = vmatprep.subr.mxu0 0.0
      %661 = vmatpush1.msra.mxu0 0.0
      %662 = vmatprep.subr.mxu0 0.0
      %663 = vmatpush1.msra.mxu0 0.0
      %664 = vmatprep.subr.mxu0 0.0
      %665 = vmatpush1.msra.mxu0 0.0
      %666 = vmatprep.subr.mxu0 0.0
      %667 = vmatpush1.msra.mxu0 0.0
      %668 = vmatprep.subr.mxu0 0.0
      %669 = vmatpush1.msra.mxu0 0.0
      %670 = vmatprep.subr.mxu0 0.0
      %671 = vmatpush1.msra.mxu0 0.0
      %672 = vmatprep.subr.mxu0 0.0
      %673 = vmatpush1.msra.mxu0 0.0
      %674 = vmatprep.subr.mxu0 0.0
      %675 = vmatpush1.msra.mxu0 0.0
      %676 = vmatprep.subr.mxu0 0.0
      %677 = vmatpush1.msra.mxu0 0.0
      %678 = vmatprep.subr.mxu0 0.0
      %679 = vmatpush1.msra.mxu0 0.0
      %680 = vmatprep.subr.mxu0 0.0
      %681 = vmatpush1.msra.mxu0 0.0
      %682 = vmatprep.subr.mxu0 0.0
      %683 = vmatpush1.msra.mxu0 0.0
      %684 = vmatprep.subr.mxu0 0.0
      %685 = vmatpush1.msra.mxu0 0.0
      %686 = vmatprep.subr.mxu0 0.0
      %687 = vmatpush1.msra.mxu0 0.0
      %688 = vmatprep.subr.mxu0 0.0
      %689 = vmatpush1.msra.mxu0 0.0
      %690 = vmatprep.subr.mxu0 0.0
      %691 = vmatpush1.msra.mxu0 0.0
      %692 = vmatprep.subr.mxu0 0.0
      %693 = vmatpush1.msra.mxu0 0.0
      %694 = vmatprep.subr.mxu0 0.0
      %695 = vmatpush1.msra.mxu0 0.0
      %696 = vmatprep.subr.mxu0 0.0
      %697 = vmatpush1.msra.mxu0 0.0
      %698 = vmatprep.mubr.f32.mxu0 0.0
      %v699 = vand.u32 %v506, 4294901760
      %700 = vmatmul.mubr.f32.gmra.mrb[0].mxu0 %v699
      %v701 = vpop.f32.mrb[0].mxu0
      %v702 = vadd.f32 %v591, %v701
      %v703 = vpop.f32.mrb[0].mxu0
      %704 = vmatprep.mubr.f32.mxu0 0.0
      %v705 = vand.u32 %v509, 4294901760
      %706 = vmatmul.mubr.f32.gmra.mrb[0].mxu0 %v705
      %v707 = vpop.f32.mrb[0].mxu0
      %v708 = vadd.f32 %v601, %v707
      %v709 = vpop.f32.mrb[0].mxu0
      %710 = vmatprep.mubr.f32.mxu0 0.0
      %v711 = vand.u32 %v512, 4294901760
      %712 = vmatmul.mubr.f32.gmra.mrb[0].mxu0 %v711
      %v713 = vpop.f32.mrb[0].mxu0
      %v714 = vadd.f32 %v611, %v713
      %v715 = vpop.f32.mrb[0].mxu0
      %716 = vmatprep.mubr.f32.mxu0 0.0
      %v717 = vand.u32 %v515, 4294901760
      %718 = vmatmul.mubr.f32.gmra.mrb[0].mxu0 %v717
      %v719 = vpop.f32.mrb[0].mxu0
      %v720 = vadd.f32 %v621, %v719
      %v721 = vpop.f32.mrb[0].mxu0
      %722 = vdwg.mxu0
      %723 = vmatprep.subr.mxu0 0.0
      %v724 = vand.u32 %v472, 4294901760
      %v725 = vsub.f32 %v472, %v724
      %726 = vmatpush1.msra.mxu0 %v725
      %727 = vmatprep.subr.mxu0 0.0
      %v728 = vand.u32 %v473, 4294901760
      %v729 = vsub.f32 %v473, %v728
      %730 = vmatpush1.msra.mxu0 %v729
      %731 = vmatprep.subr.mxu0 0.0
      %732 = vmatpush1.msra.mxu0 0.0
      %733 = vmatprep.subr.mxu0 0.0
      %734 = vmatpush1.msra.mxu0 0.0
      %735 = vmatprep.subr.mxu0 0.0
      %736 = vmatpush1.msra.mxu0 0.0
      %737 = vmatprep.subr.mxu0 0.0
      %738 = vmatpush1.msra.mxu0 0.0
      %739 = vmatprep.subr.mxu0 0.0
      %740 = vmatpush1.msra.mxu0 0.0
      %741 = vmatprep.subr.mxu0 0.0
      %742 = vmatpush1.msra.mxu0 0.0
      %743 = vmatprep.subr.mxu0 0.0
      %744 = vmatpush1.msra.mxu0 0.0
      %745 = vmatprep.subr.mxu0 0.0
      %746 = vmatpush1.msra.mxu0 0.0
      %747 = vmatprep.subr.mxu0 0.0
      %748 = vmatpush1.msra.mxu0 0.0
      %749 = vmatprep.subr.mxu0 0.0
      %750 = vmatpush1.msra.mxu0 0.0
      %751 = vmatprep.subr.mxu0 0.0
      %752 = vmatpush1.msra.mxu0 0.0
      %753 = vmatprep.subr.mxu0 0.0
      %754 = vmatpush1.msra.mxu0 0.0
      %755 = vmatprep.subr.mxu0 0.0
      %756 = vmatpush1.msra.mxu0 0.0
      %757 = vmatprep.subr.mxu0 0.0
      %758 = vmatpush1.msra.mxu0 0.0
      %759 = vmatprep.subr.mxu0 0.0
      %760 = vmatpush1.msra.mxu0 0.0
      %761 = vmatprep.subr.mxu0 0.0
      %762 = vmatpush1.msra.mxu0 0.0
      %763 = vmatprep.subr.mxu0 0.0
      %764 = vmatpush1.msra.mxu0 0.0
      %765 = vmatprep.subr.mxu0 0.0
      %766 = vmatpush1.msra.mxu0 0.0
      %767 = vmatprep.subr.mxu0 0.0
      %768 = vmatpush1.msra.mxu0 0.0
      %769 = vmatprep.subr.mxu0 0.0
      %770 = vmatpush1.msra.mxu0 0.0
      %771 = vmatprep.subr.mxu0 0.0
      %772 = vmatpush1.msra.mxu0 0.0
      %773 = vmatprep.subr.mxu0 0.0
      %774 = vmatpush1.msra.mxu0 0.0
      %775 = vmatprep.subr.mxu0 0.0
      %776 = vmatpush1.msra.mxu0 0.0
      %777 = vmatprep.subr.mxu0 0.0
      %778 = vmatpush1.msra.mxu0 0.0
      %779 = vmatprep.subr.mxu0 0.0
      %780 = vmatpush1.msra.mxu0 0.0
      %781 = vmatprep.subr.mxu0 0.0
      %782 = vmatpush1.msra.mxu0 0.0
      %783 = vmatprep.subr.mxu0 0.0
      %784 = vmatpush1.msra.mxu0 0.0
      %785 = vmatprep.subr.mxu0 0.0
      %786 = vmatpush1.msra.mxu0 0.0
      %787 = vmatprep.subr.mxu0 0.0
      %788 = vmatpush1.msra.mxu0 0.0
      %789 = vmatprep.subr.mxu0 0.0
      %790 = vmatpush1.msra.mxu0 0.0
      %791 = vmatprep.mubr.f32.mxu0 0.0
      %v792 = vand.u32 %v506, 4294901760
      %v793 = vsub.f32 %v506, %v792
      %794 = vmatmul.mubr.f32.gmra.mrb[0].mxu0 %v793
      %v795 = vpop.f32.mrb[0].mxu0
      %v796 = vadd.f32 %v702, %v795
      %v797 = vpop.f32.mrb[0].mxu0
      %798 = vmatprep.mubr.f32.mxu0 0.0
      %v799 = vand.u32 %v509, 4294901760
      %v800 = vsub.f32 %v509, %v799
      %801 = vmatmul.mubr.f32.gmra.mrb[0].mxu0 %v800
      %v802 = vpop.f32.mrb[0].mxu0
      %v803 = vadd.f32 %v708, %v802
      %v804 = vpop.f32.mrb[0].mxu0
      %805 = vmatprep.mubr.f32.mxu0 0.0
      %v806 = vand.u32 %v512, 4294901760
      %v807 = vsub.f32 %v512, %v806
      %808 = vmatmul.mubr.f32.gmra.mrb[0].mxu0 %v807
      %v809 = vpop.f32.mrb[0].mxu0
      %v810 = vadd.f32 %v714, %v809
      %v811 = vpop.f32.mrb[0].mxu0
      %812 = vmatprep.mubr.f32.mxu0 0.0
      %v813 = vand.u32 %v515, 4294901760
      %v814 = vsub.f32 %v515, %v813
      %815 = vmatmul.mubr.f32.gmra.mrb[0].mxu0 %v814
      %v816 = vpop.f32.mrb[0].mxu0
      %v817 = vadd.f32 %v720, %v816
      %v818 = vpop.f32.mrb[0].mxu0
      %819 = vdwg.mxu0
      %820 = vmatprep.subr.mxu0 0.0
      %v821 = vand.u32 %v472, 4294901760
      %822 = vmatpush1.msra.mxu0 %v821
      %823 = vmatprep.subr.mxu0 0.0
      %v824 = vand.u32 %v473, 4294901760
      %825 = vmatpush1.msra.mxu0 %v824
      %826 = vmatprep.subr.mxu0 0.0
      %827 = vmatpush1.msra.mxu0 0.0
      %828 = vmatprep.subr.mxu0 0.0
      %829 = vmatpush1.msra.mxu0 0.0
      %830 = vmatprep.subr.mxu0 0.0
      %831 = vmatpush1.msra.mxu0 0.0
      %832 = vmatprep.subr.mxu0 0.0
      %833 = vmatpush1.msra.mxu0 0.0
      %834 = vmatprep.subr.mxu0 0.0
      %835 = vmatpush1.msra.mxu0 0.0
      %836 = vmatprep.subr.mxu0 0.0
      %837 = vmatpush1.msra.mxu0 0.0
      %838 = vmatprep.subr.mxu0 0.0
      %839 = vmatpush1.msra.mxu0 0.0
      %840 = vmatprep.subr.mxu0 0.0
      %841 = vmatpush1.msra.mxu0 0.0
      %842 = vmatprep.subr.mxu0 0.0
      %843 = vmatpush1.msra.mxu0 0.0
      %844 = vmatprep.subr.mxu0 0.0
      %845 = vmatpush1.msra.mxu0 0.0
      %846 = vmatprep.subr.mxu0 0.0
      %847 = vmatpush1.msra.mxu0 0.0
      %848 = vmatprep.subr.mxu0 0.0
      %849 = vmatpush1.msra.mxu0 0.0
      %850 = vmatprep.subr.mxu0 0.0
      %851 = vmatpush1.msra.mxu0 0.0
      %852 = vmatprep.subr.mxu0 0.0
      %853 = vmatpush1.msra.mxu0 0.0
      %854 = vmatprep.subr.mxu0 0.0
      %855 = vmatpush1.msra.mxu0 0.0
      %856 = vmatprep.subr.mxu0 0.0
      %857 = vmatpush1.msra.mxu0 0.0
      %858 = vmatprep.subr.mxu0 0.0
      %859 = vmatpush1.msra.mxu0 0.0
      %860 = vmatprep.subr.mxu0 0.0
      %861 = vmatpush1.msra.mxu0 0.0
      %862 = vmatprep.subr.mxu0 0.0
      %863 = vmatpush1.msra.mxu0 0.0
      %864 = vmatprep.subr.mxu0 0.0
      %865 = vmatpush1.msra.mxu0 0.0
      %866 = vmatprep.subr.mxu0 0.0
      %867 = vmatpush1.msra.mxu0 0.0
      %868 = vmatprep.subr.mxu0 0.0
      %869 = vmatpush1.msra.mxu0 0.0
      %870 = vmatprep.subr.mxu0 0.0
      %871 = vmatpush1.msra.mxu0 0.0
      %872 = vmatprep.subr.mxu0 0.0
      %873 = vmatpush1.msra.mxu0 0.0
      %874 = vmatprep.subr.mxu0 0.0
      %875 = vmatpush1.msra.mxu0 0.0
      %876 = vmatprep.subr.mxu0 0.0
      %877 = vmatpush1.msra.mxu0 0.0
      %878 = vmatprep.subr.mxu0 0.0
      %879 = vmatpush1.msra.mxu0 0.0
      %880 = vmatprep.subr.mxu0 0.0
      %881 = vmatpush1.msra.mxu0 0.0
      %882 = vmatprep.subr.mxu0 0.0
      %883 = vmatpush1.msra.mxu0 0.0
      %884 = vmatprep.subr.mxu0 0.0
      %885 = vmatpush1.msra.mxu0 0.0
      %886 = vmatprep.mubr.f32.mxu0 0.0
      %v887 = vand.u32 %v506, 4294901760
      %v888 = vsub.f32 %v506, %v887
      %v889 = vand.u32 %v888, 4294901760
      %890 = vmatmul.mubr.f32.gmra.mrb[0].mxu0 %v889
      %v891 = vpop.f32.mrb[0].mxu0
      %v892 = vadd.f32 %v796, %v891
      %v893 = vpop.f32.mrb[0].mxu0
      %894 = vmatprep.mubr.f32.mxu0 0.0
      %v895 = vand.u32 %v509, 4294901760
      %v896 = vsub.f32 %v509, %v895
      %v897 = vand.u32 %v896, 4294901760
      %898 = vmatmul.mubr.f32.gmra.mrb[0].mxu0 %v897
      %v899 = vpop.f32.mrb[0].mxu0
      %v900 = vadd.f32 %v803, %v899
      %v901 = vpop.f32.mrb[0].mxu0
      %902 = vmatprep.mubr.f32.mxu0 0.0
      %v903 = vand.u32 %v512, 4294901760
      %v904 = vsub.f32 %v512, %v903
      %v905 = vand.u32 %v904, 4294901760
      %906 = vmatmul.mubr.f32.gmra.mrb[0].mxu0 %v905
      %v907 = vpop.f32.mrb[0].mxu0
      %v908 = vadd.f32 %v810, %v907
      %v909 = vpop.f32.mrb[0].mxu0
      %910 = vmatprep.mubr.f32.mxu0 0.0
      %v911 = vand.u32 %v515, 4294901760
      %v912 = vsub.f32 %v515, %v911
      %v913 = vand.u32 %v912, 4294901760
      %914 = vmatmul.mubr.f32.gmra.mrb[0].mxu0 %v913
      %v915 = vpop.f32.mrb[0].mxu0
      %v916 = vadd.f32 %v817, %v915
      %v917 = vpop.f32.mrb[0].mxu0
      %918 = vdwg.mxu0
      %919 = vmatprep.subr.mxu0 0.0
      %v920 = vand.u32 %v472, 4294901760
      %v921 = vsub.f32 %v472, %v920
      %v922 = vand.u32 %v921, 4294901760
      %923 = vmatpush1.msra.mxu0 %v922
      %924 = vmatprep.subr.mxu0 0.0
      %v925 = vand.u32 %v473, 4294901760
      %v926 = vsub.f32 %v473, %v925
      %v927 = vand.u32 %v926, 4294901760
      %928 = vmatpush1.msra.mxu0 %v927
      %929 = vmatprep.subr.mxu0 0.0
      %930 = vmatpush1.msra.mxu0 0.0
      %931 = vmatprep.subr.mxu0 0.0
      %932 = vmatpush1.msra.mxu0 0.0
      %933 = vmatprep.subr.mxu0 0.0
      %934 = vmatpush1.msra.mxu0 0.0
      %935 = vmatprep.subr.mxu0 0.0
      %936 = vmatpush1.msra.mxu0 0.0
      %937 = vmatprep.subr.mxu0 0.0
      %938 = vmatpush1.msra.mxu0 0.0
      %939 = vmatprep.subr.mxu0 0.0
      %940 = vmatpush1.msra.mxu0 0.0
      %941 = vmatprep.subr.mxu0 0.0
      %942 = vmatpush1.msra.mxu0 0.0
      %943 = vmatprep.subr.mxu0 0.0
      %944 = vmatpush1.msra.mxu0 0.0
      %945 = vmatprep.subr.mxu0 0.0
      %946 = vmatpush1.msra.mxu0 0.0
      %947 = vmatprep.subr.mxu0 0.0
      %948 = vmatpush1.msra.mxu0 0.0
      %949 = vmatprep.subr.mxu0 0.0
      %950 = vmatpush1.msra.mxu0 0.0
      %951 = vmatprep.subr.mxu0 0.0
      %952 = vmatpush1.msra.mxu0 0.0
      %953 = vmatprep.subr.mxu0 0.0
      %954 = vmatpush1.msra.mxu0 0.0
      %955 = vmatprep.subr.mxu0 0.0
      %956 = vmatpush1.msra.mxu0 0.0
      %957 = vmatprep.subr.mxu0 0.0
      %958 = vmatpush1.msra.mxu0 0.0
      %959 = vmatprep.subr.mxu0 0.0
      %960 = vmatpush1.msra.mxu0 0.0
      %961 = vmatprep.subr.mxu0 0.0
      %962 = vmatpush1.msra.mxu0 0.0
      %963 = vmatprep.subr.mxu0 0.0
      %964 = vmatpush1.msra.mxu0 0.0
      %965 = vmatprep.subr.mxu0 0.0
      %966 = vmatpush1.msra.mxu0 0.0
      %967 = vmatprep.subr.mxu0 0.0
      %968 = vmatpush1.msra.mxu0 0.0
      %969 = vmatprep.subr.mxu0 0.0
      %970 = vmatpush1.msra.mxu0 0.0
      %971 = vmatprep.subr.mxu0 0.0
      %972 = vmatpush1.msra.mxu0 0.0
      %973 = vmatprep.subr.mxu0 0.0
      %974 = vmatpush1.msra.mxu0 0.0
      %975 = vmatprep.subr.mxu0 0.0
      %976 = vmatpush1.msra.mxu0 0.0
      %977 = vmatprep.subr.mxu0 0.0
      %978 = vmatpush1.msra.mxu0 0.0
      %979 = vmatprep.subr.mxu0 0.0
      %980 = vmatpush1.msra.mxu0 0.0
      %981 = vmatprep.subr.mxu0 0.0
      %982 = vmatpush1.msra.mxu0 0.0
      %983 = vmatprep.subr.mxu0 0.0
      %984 = vmatpush1.msra.mxu0 0.0
      %985 = vmatprep.subr.mxu0 0.0
      %986 = vmatpush1.msra.mxu0 0.0
      %987 = vmatprep.subr.mxu0 0.0
      %988 = vmatpush1.msra.mxu0 0.0
      %989 = vmatprep.mubr.f32.mxu0 0.0
      %v990 = vand.u32 %v506, 4294901760
      %991 = vmatmul.mubr.f32.gmra.mrb[0].mxu0 %v990
      %v992 = vpop.f32.mrb[0].mxu0
      %v993 = vadd.f32 %v892, %v992
      %v994 = vpop.f32.mrb[0].mxu0
      %995 = vmatprep.mubr.f32.mxu0 0.0
      %v996 = vand.u32 %v509, 4294901760
      %997 = vmatmul.mubr.f32.gmra.mrb[0].mxu0 %v996
      %v998 = vpop.f32.mrb[0].mxu0
      %v999 = vadd.f32 %v900, %v998
      %v1000 = vpop.f32.mrb[0].mxu0
      %1001 = vmatprep.mubr.f32.mxu0 0.0
      %v1002 = vand.u32 %v512, 4294901760
      %1003 = vmatmul.mubr.f32.gmra.mrb[0].mxu0 %v1002
      %v1004 = vpop.f32.mrb[0].mxu0
      %v1005 = vadd.f32 %v908, %v1004
      %v1006 = vpop.f32.mrb[0].mxu0
      %1007 = vmatprep.mubr.f32.mxu0 0.0
      %v1008 = vand.u32 %v515, 4294901760
      %1009 = vmatmul.mubr.f32.gmra.mrb[0].mxu0 %v1008
      %v1010 = vpop.f32.mrb[0].mxu0
      %v1011 = vadd.f32 %v916, %v1010
      %v1012 = vpop.f32.mrb[0].mxu0
      %1013 = vdwg.mxu0
      %1014 = vmatprep.subr.mxu0 0.0
      %v1015 = vand.u32 %v472, 4294901760
      %1016 = vmatpush1.msra.mxu0 %v1015
      %1017 = vmatprep.subr.mxu0 0.0
      %v1018 = vand.u32 %v473, 4294901760
      %1019 = vmatpush1.msra.mxu0 %v1018
      %1020 = vmatprep.subr.mxu0 0.0
      %1021 = vmatpush1.msra.mxu0 0.0
      %1022 = vmatprep.subr.mxu0 0.0
      %1023 = vmatpush1.msra.mxu0 0.0
      %1024 = vmatprep.subr.mxu0 0.0
      %1025 = vmatpush1.msra.mxu0 0.0
      %1026 = vmatprep.subr.mxu0 0.0
      %1027 = vmatpush1.msra.mxu0 0.0
      %1028 = vmatprep.subr.mxu0 0.0
      %1029 = vmatpush1.msra.mxu0 0.0
      %1030 = vmatprep.subr.mxu0 0.0
      %1031 = vmatpush1.msra.mxu0 0.0
      %1032 = vmatprep.subr.mxu0 0.0
      %1033 = vmatpush1.msra.mxu0 0.0
      %1034 = vmatprep.subr.mxu0 0.0
      %1035 = vmatpush1.msra.mxu0 0.0
      %1036 = vmatprep.subr.mxu0 0.0
      %1037 = vmatpush1.msra.mxu0 0.0
      %1038 = vmatprep.subr.mxu0 0.0
      %1039 = vmatpush1.msra.mxu0 0.0
      %1040 = vmatprep.subr.mxu0 0.0
      %1041 = vmatpush1.msra.mxu0 0.0
      %1042 = vmatprep.subr.mxu0 0.0
      %1043 = vmatpush1.msra.mxu0 0.0
      %1044 = vmatprep.subr.mxu0 0.0
      %1045 = vmatpush1.msra.mxu0 0.0
      %1046 = vmatprep.subr.mxu0 0.0
      %1047 = vmatpush1.msra.mxu0 0.0
      %1048 = vmatprep.subr.mxu0 0.0
      %1049 = vmatpush1.msra.mxu0 0.0
      %1050 = vmatprep.subr.mxu0 0.0
      %1051 = vmatpush1.msra.mxu0 0.0
      %1052 = vmatprep.subr.mxu0 0.0
      %1053 = vmatpush1.msra.mxu0 0.0
      %1054 = vmatprep.subr.mxu0 0.0
      %1055 = vmatpush1.msra.mxu0 0.0
      %1056 = vmatprep.subr.mxu0 0.0
      %1057 = vmatpush1.msra.mxu0 0.0
      %1058 = vmatprep.subr.mxu0 0.0
      %1059 = vmatpush1.msra.mxu0 0.0
      %1060 = vmatprep.subr.mxu0 0.0
      %1061 = vmatpush1.msra.mxu0 0.0
      %1062 = vmatprep.subr.mxu0 0.0
      %1063 = vmatpush1.msra.mxu0 0.0
      %1064 = vmatprep.subr.mxu0 0.0
      %1065 = vmatpush1.msra.mxu0 0.0
      %1066 = vmatprep.subr.mxu0 0.0
      %1067 = vmatpush1.msra.mxu0 0.0
      %1068 = vmatprep.subr.mxu0 0.0
      %1069 = vmatpush1.msra.mxu0 0.0
      %1070 = vmatprep.subr.mxu0 0.0
      %1071 = vmatpush1.msra.mxu0 0.0
      %1072 = vmatprep.subr.mxu0 0.0
      %1073 = vmatpush1.msra.mxu0 0.0
      %1074 = vmatprep.subr.mxu0 0.0
      %1075 = vmatpush1.msra.mxu0 0.0
      %1076 = vmatprep.subr.mxu0 0.0
      %1077 = vmatpush1.msra.mxu0 0.0
      %1078 = vmatprep.subr.mxu0 0.0
      %1079 = vmatpush1.msra.mxu0 0.0
      %1080 = vmatprep.mubr.f32.mxu0 0.0
      %v1081 = vand.u32 %v506, 4294901760
      %1082 = vmatmul.mubr.f32.gmra.mrb[0].mxu0 %v1081
      %v1083 = vpop.f32.mrb[0].mxu0
      %v1084 = vadd.f32 %v993, %v1083
      %v1085 = vpop.f32.mrb[0].mxu0
      %1086 = vmatprep.mubr.f32.mxu0 0.0
      %v1087 = vand.u32 %v509, 4294901760
      %1088 = vmatmul.mubr.f32.gmra.mrb[0].mxu0 %v1087
      %v1089 = vpop.f32.mrb[0].mxu0
      %v1090 = vadd.f32 %v999, %v1089
      %v1091 = vpop.f32.mrb[0].mxu0
      %1092 = vmatprep.mubr.f32.mxu0 0.0
      %v1093 = vand.u32 %v512, 4294901760
      %1094 = vmatmul.mubr.f32.gmra.mrb[0].mxu0 %v1093
      %v1095 = vpop.f32.mrb[0].mxu0
      %v1096 = vadd.f32 %v1005, %v1095
      %v1097 = vpop.f32.mrb[0].mxu0
      %1098 = vmatprep.mubr.f32.mxu0 0.0
      %v1099 = vand.u32 %v515, 4294901760
      %1100 = vmatmul.mubr.f32.gmra.mrb[0].mxu0 %v1099
      %v1101 = vpop.f32.mrb[0].mxu0
      %v1102 = vadd.f32 %v1011, %v1101
      %v1103 = vpop.f32.mrb[0].mxu0
      %1104 = vdwg.mxu0
      %v1105 = vld [vmem:[%s3] sm:$0xff]
      %v1106 = vld [vmem:[%s3 + $0x8] sm:$0xff]
      %v1107 = vld [vmem:[%s4] sm:$0x1]
      %v1109 = vlaneseq
      %v1110 = vshrl.u32 %v1109, 7
      %v1111 = vsub.s32 0, %v1110
      %v1112 = vrot.slane %v1107, %v1111
      %v1115 = vsel %vm504, %v468, 0
      %v1118 = vsel %vm504, %v469, 0
      %v1121 = vsel %vm504, %v470, 0
      %v1124 = vsel %vm504, %v471, 0
      %1126 = vmatprep.subr.mxu0 0.0
      %v1127 = vand.u32 %v1105, 4294901760
      %1128 = vmatpush1.msra.mxu0 %v1127
      %1129 = vmatprep.subr.mxu0 0.0
      %v1130 = vand.u32 %v1106, 4294901760
      %1131 = vmatpush1.msra.mxu0 %v1130
      %1132 = vmatprep.subr.mxu0 0.0
      %1133 = vmatpush1.msra.mxu0 0.0
      %1134 = vmatprep.subr.mxu0 0.0
      %1135 = vmatpush1.msra.mxu0 0.0
      %1136 = vmatprep.subr.mxu0 0.0
      %1137 = vmatpush1.msra.mxu0 0.0
      %1138 = vmatprep.subr.mxu0 0.0
      %1139 = vmatpush1.msra.mxu0 0.0
      %1140 = vmatprep.subr.mxu0 0.0
      %1141 = vmatpush1.msra.mxu0 0.0
      %1142 = vmatprep.subr.mxu0 0.0
      %1143 = vmatpush1.msra.mxu0 0.0
      %1144 = vmatprep.subr.mxu0 0.0
      %1145 = vmatpush1.msra.mxu0 0.0
      %1146 = vmatprep.subr.mxu0 0.0
      %1147 = vmatpush1.msra.mxu0 0.0
      %1148 = vmatprep.subr.mxu0 0.0
      %1149 = vmatpush1.msra.mxu0 0.0
      %1150 = vmatprep.subr.mxu0 0.0
      %1151 = vmatpush1.msra.mxu0 0.0
      %1152 = vmatprep.subr.mxu0 0.0
      %1153 = vmatpush1.msra.mxu0 0.0
      %1154 = vmatprep.subr.mxu0 0.0
      %1155 = vmatpush1.msra.mxu0 0.0
      %1156 = vmatprep.subr.mxu0 0.0
      %1157 = vmatpush1.msra.mxu0 0.0
      %1158 = vmatprep.subr.mxu0 0.0
      %1159 = vmatpush1.msra.mxu0 0.0
      %1160 = vmatprep.subr.mxu0 0.0
      %1161 = vmatpush1.msra.mxu0 0.0
      %1162 = vmatprep.subr.mxu0 0.0
      %1163 = vmatpush1.msra.mxu0 0.0
      %1164 = vmatprep.subr.mxu0 0.0
      %1165 = vmatpush1.msra.mxu0 0.0
      %1166 = vmatprep.subr.mxu0 0.0
      %1167 = vmatpush1.msra.mxu0 0.0
      %1168 = vmatprep.subr.mxu0 0.0
      %1169 = vmatpush1.msra.mxu0 0.0
      %1170 = vmatprep.subr.mxu0 0.0
      %1171 = vmatpush1.msra.mxu0 0.0
      %1172 = vmatprep.subr.mxu0 0.0
      %1173 = vmatpush1.msra.mxu0 0.0
      %1174 = vmatprep.subr.mxu0 0.0
      %1175 = vmatpush1.msra.mxu0 0.0
      %1176 = vmatprep.subr.mxu0 0.0
      %1177 = vmatpush1.msra.mxu0 0.0
      %1178 = vmatprep.subr.mxu0 0.0
      %1179 = vmatpush1.msra.mxu0 0.0
      %1180 = vmatprep.subr.mxu0 0.0
      %1181 = vmatpush1.msra.mxu0 0.0
      %1182 = vmatprep.subr.mxu0 0.0
      %1183 = vmatpush1.msra.mxu0 0.0
      %1184 = vmatprep.subr.mxu0 0.0
      %1185 = vmatpush1.msra.mxu0 0.0
      %1186 = vmatprep.subr.mxu0 0.0
      %1187 = vmatpush1.msra.mxu0 0.0
      %1188 = vmatprep.subr.mxu0 0.0
      %1189 = vmatpush1.msra.mxu0 0.0
      %1190 = vmatprep.subr.mxu0 0.0
      %1191 = vmatpush1.msra.mxu0 0.0
      %1192 = vmatprep.mubr.f32.mxu0 0.0
      %v1193 = vand.u32 %v1115, 4294901760
      %v1194 = vsub.f32 %v1115, %v1193
      %v1195 = vand.u32 %v1194, 4294901760
      %v1196 = vsub.f32 %v1194, %v1195
      %v1197 = vand.u32 %v1196, 4294901760
      %1198 = vmatmul.mubr.f32.gmra.mrb[0].mxu0 %v1197
      %v1199 = vpop.f32.mrb[0].mxu0
      %v1200 = vadd.f32 %v1112, %v1199
      %v1201 = vpop.f32.mrb[0].mxu0
      %1202 = vmatprep.mubr.f32.mxu0 0.0
      %v1203 = vand.u32 %v1118, 4294901760
      %v1204 = vsub.f32 %v1118, %v1203
      %v1205 = vand.u32 %v1204, 4294901760
      %v1206 = vsub.f32 %v1204, %v1205
      %v1207 = vand.u32 %v1206, 4294901760
      %1208 = vmatmul.mubr.f32.gmra.mrb[0].mxu0 %v1207
      %v1209 = vpop.f32.mrb[0].mxu0
      %v1210 = vadd.f32 %v1112, %v1209
      %v1211 = vpop.f32.mrb[0].mxu0
      %1212 = vmatprep.mubr.f32.mxu0 0.0
      %v1213 = vand.u32 %v1121, 4294901760
      %v1214 = vsub.f32 %v1121, %v1213
      %v1215 = vand.u32 %v1214, 4294901760
      %v1216 = vsub.f32 %v1214, %v1215
      %v1217 = vand.u32 %v1216, 4294901760
      %1218 = vmatmul.mubr.f32.gmra.mrb[0].mxu0 %v1217
      %v1219 = vpop.f32.mrb[0].mxu0
      %v1220 = vadd.f32 %v1112, %v1219
      %v1221 = vpop.f32.mrb[0].mxu0
      %1222 = vmatprep.mubr.f32.mxu0 0.0
      %v1223 = vand.u32 %v1124, 4294901760
      %v1224 = vsub.f32 %v1124, %v1223
      %v1225 = vand.u32 %v1224, 4294901760
      %v1226 = vsub.f32 %v1224, %v1225
      %v1227 = vand.u32 %v1226, 4294901760
      %1228 = vmatmul.mubr.f32.gmra.mrb[0].mxu0 %v1227
      %v1229 = vpop.f32.mrb[0].mxu0
      %v1230 = vadd.f32 %v1112, %v1229
      %v1231 = vpop.f32.mrb[0].mxu0
      %1232 = vdwg.mxu0
      %1233 = vmatprep.subr.mxu0 0.0
      %v1234 = vand.u32 %v1105, 4294901760
      %v1235 = vsub.f32 %v1105, %v1234
      %v1236 = vand.u32 %v1235, 4294901760
      %v1237 = vsub.f32 %v1235, %v1236
      %v1238 = vand.u32 %v1237, 4294901760
      %1239 = vmatpush1.msra.mxu0 %v1238
      %1240 = vmatprep.subr.mxu0 0.0
      %v1241 = vand.u32 %v1106, 4294901760
      %v1242 = vsub.f32 %v1106, %v1241
      %v1243 = vand.u32 %v1242, 4294901760
      %v1244 = vsub.f32 %v1242, %v1243
      %v1245 = vand.u32 %v1244, 4294901760
      %1246 = vmatpush1.msra.mxu0 %v1245
      %1247 = vmatprep.subr.mxu0 0.0
      %1248 = vmatpush1.msra.mxu0 0.0
      %1249 = vmatprep.subr.mxu0 0.0
      %1250 = vmatpush1.msra.mxu0 0.0
      %1251 = vmatprep.subr.mxu0 0.0
      %1252 = vmatpush1.msra.mxu0 0.0
      %1253 = vmatprep.subr.mxu0 0.0
      %1254 = vmatpush1.msra.mxu0 0.0
      %1255 = vmatprep.subr.mxu0 0.0
      %1256 = vmatpush1.msra.mxu0 0.0
      %1257 = vmatprep.subr.mxu0 0.0
      %1258 = vmatpush1.msra.mxu0 0.0
      %1259 = vmatprep.subr.mxu0 0.0
      %1260 = vmatpush1.msra.mxu0 0.0
      %1261 = vmatprep.subr.mxu0 0.0
      %1262 = vmatpush1.msra.mxu0 0.0
      %1263 = vmatprep.subr.mxu0 0.0
      %1264 = vmatpush1.msra.mxu0 0.0
      %1265 = vmatprep.subr.mxu0 0.0
      %1266 = vmatpush1.msra.mxu0 0.0
      %1267 = vmatprep.subr.mxu0 0.0
      %1268 = vmatpush1.msra.mxu0 0.0
      %1269 = vmatprep.subr.mxu0 0.0
      %1270 = vmatpush1.msra.mxu0 0.0
      %1271 = vmatprep.subr.mxu0 0.0
      %1272 = vmatpush1.msra.mxu0 0.0
      %1273 = vmatprep.subr.mxu0 0.0
      %1274 = vmatpush1.msra.mxu0 0.0
      %1275 = vmatprep.subr.mxu0 0.0
      %1276 = vmatpush1.msra.mxu0 0.0
      %1277 = vmatprep.subr.mxu0 0.0
      %1278 = vmatpush1.msra.mxu0 0.0
      %1279 = vmatprep.subr.mxu0 0.0
      %1280 = vmatpush1.msra.mxu0 0.0
      %1281 = vmatprep.subr.mxu0 0.0
      %1282 = vmatpush1.msra.mxu0 0.0
      %1283 = vmatprep.subr.mxu0 0.0
      %1284 = vmatpush1.msra.mxu0 0.0
      %1285 = vmatprep.subr.mxu0 0.0
      %1286 = vmatpush1.msra.mxu0 0.0
      %1287 = vmatprep.subr.mxu0 0.0
      %1288 = vmatpush1.msra.mxu0 0.0
      %1289 = vmatprep.subr.mxu0 0.0
      %1290 = vmatpush1.msra.mxu0 0.0
      %1291 = vmatprep.subr.mxu0 0.0
      %1292 = vmatpush1.msra.mxu0 0.0
      %1293 = vmatprep.subr.mxu0 0.0
      %1294 = vmatpush1.msra.mxu0 0.0
      %1295 = vmatprep.subr.mxu0 0.0
      %1296 = vmatpush1.msra.mxu0 0.0
      %1297 = vmatprep.subr.mxu0 0.0
      %1298 = vmatpush1.msra.mxu0 0.0
      %1299 = vmatprep.subr.mxu0 0.0
      %1300 = vmatpush1.msra.mxu0 0.0
      %1301 = vmatprep.subr.mxu0 0.0
      %1302 = vmatpush1.msra.mxu0 0.0
      %1303 = vmatprep.subr.mxu0 0.0
      %1304 = vmatpush1.msra.mxu0 0.0
      %1305 = vmatprep.subr.mxu0 0.0
      %1306 = vmatpush1.msra.mxu0 0.0
      %1307 = vmatprep.mubr.f32.mxu0 0.0
      %v1308 = vand.u32 %v1115, 4294901760
      %1309 = vmatmul.mubr.f32.gmra.mrb[0].mxu0 %v1308
      %v1310 = vpop.f32.mrb[0].mxu0
      %v1311 = vadd.f32 %v1200, %v1310
      %v1312 = vpop.f32.mrb[0].mxu0
      %1313 = vmatprep.mubr.f32.mxu0 0.0
      %v1314 = vand.u32 %v1118, 4294901760
      %1315 = vmatmul.mubr.f32.gmra.mrb[0].mxu0 %v1314
      %v1316 = vpop.f32.mrb[0].mxu0
      %v1317 = vadd.f32 %v1210, %v1316
      %v1318 = vpop.f32.mrb[0].mxu0
      %1319 = vmatprep.mubr.f32.mxu0 0.0
      %v1320 = vand.u32 %v1121, 4294901760
      %1321 = vmatmul.mubr.f32.gmra.mrb[0].mxu0 %v1320
      %v1322 = vpop.f32.mrb[0].mxu0
      %v1323 = vadd.f32 %v1220, %v1322
      %v1324 = vpop.f32.mrb[0].mxu0
      %1325 = vmatprep.mubr.f32.mxu0 0.0
      %v1326 = vand.u32 %v1124, 4294901760
      %1327 = vmatmul.mubr.f32.gmra.mrb[0].mxu0 %v1326
      %v1328 = vpop.f32.mrb[0].mxu0
      %v1329 = vadd.f32 %v1230, %v1328
      %v1330 = vpop.f32.mrb[0].mxu0
      %1331 = vdwg.mxu0
      %1332 = vmatprep.subr.mxu0 0.0
      %v1333 = vand.u32 %v1105, 4294901760
      %v1334 = vsub.f32 %v1105, %v1333
      %1335 = vmatpush1.msra.mxu0 %v1334
      %1336 = vmatprep.subr.mxu0 0.0
      %v1337 = vand.u32 %v1106, 4294901760
      %v1338 = vsub.f32 %v1106, %v1337
      %1339 = vmatpush1.msra.mxu0 %v1338
      %1340 = vmatprep.subr.mxu0 0.0
      %1341 = vmatpush1.msra.mxu0 0.0
      %1342 = vmatprep.subr.mxu0 0.0
      %1343 = vmatpush1.msra.mxu0 0.0
      %1344 = vmatprep.subr.mxu0 0.0
      %1345 = vmatpush1.msra.mxu0 0.0
      %1346 = vmatprep.subr.mxu0 0.0
      %1347 = vmatpush1.msra.mxu0 0.0
      %1348 = vmatprep.subr.mxu0 0.0
      %1349 = vmatpush1.msra.mxu0 0.0
      %1350 = vmatprep.subr.mxu0 0.0
      %1351 = vmatpush1.msra.mxu0 0.0
      %1352 = vmatprep.subr.mxu0 0.0
      %1353 = vmatpush1.msra.mxu0 0.0
      %1354 = vmatprep.subr.mxu0 0.0
      %1355 = vmatpush1.msra.mxu0 0.0
      %1356 = vmatprep.subr.mxu0 0.0
      %1357 = vmatpush1.msra.mxu0 0.0
      %1358 = vmatprep.subr.mxu0 0.0
      %1359 = vmatpush1.msra.mxu0 0.0
      %1360 = vmatprep.subr.mxu0 0.0
      %1361 = vmatpush1.msra.mxu0 0.0
      %1362 = vmatprep.subr.mxu0 0.0
      %1363 = vmatpush1.msra.mxu0 0.0
      %1364 = vmatprep.subr.mxu0 0.0
      %1365 = vmatpush1.msra.mxu0 0.0
      %1366 = vmatprep.subr.mxu0 0.0
      %1367 = vmatpush1.msra.mxu0 0.0
      %1368 = vmatprep.subr.mxu0 0.0
      %1369 = vmatpush1.msra.mxu0 0.0
      %1370 = vmatprep.subr.mxu0 0.0
      %1371 = vmatpush1.msra.mxu0 0.0
      %1372 = vmatprep.subr.mxu0 0.0
      %1373 = vmatpush1.msra.mxu0 0.0
      %1374 = vmatprep.subr.mxu0 0.0
      %1375 = vmatpush1.msra.mxu0 0.0
      %1376 = vmatprep.subr.mxu0 0.0
      %1377 = vmatpush1.msra.mxu0 0.0
      %1378 = vmatprep.subr.mxu0 0.0
      %1379 = vmatpush1.msra.mxu0 0.0
      %1380 = vmatprep.subr.mxu0 0.0
      %1381 = vmatpush1.msra.mxu0 0.0
      %1382 = vmatprep.subr.mxu0 0.0
      %1383 = vmatpush1.msra.mxu0 0.0
      %1384 = vmatprep.subr.mxu0 0.0
      %1385 = vmatpush1.msra.mxu0 0.0
      %1386 = vmatprep.subr.mxu0 0.0
      %1387 = vmatpush1.msra.mxu0 0.0
      %1388 = vmatprep.subr.mxu0 0.0
      %1389 = vmatpush1.msra.mxu0 0.0
      %1390 = vmatprep.subr.mxu0 0.0
      %1391 = vmatpush1.msra.mxu0 0.0
      %1392 = vmatprep.subr.mxu0 0.0
      %1393 = vmatpush1.msra.mxu0 0.0
      %1394 = vmatprep.subr.mxu0 0.0
      %1395 = vmatpush1.msra.mxu0 0.0
      %1396 = vmatprep.subr.mxu0 0.0
      %1397 = vmatpush1.msra.mxu0 0.0
      %1398 = vmatprep.subr.mxu0 0.0
      %1399 = vmatpush1.msra.mxu0 0.0
      %1400 = vmatprep.mubr.f32.mxu0 0.0
      %v1401 = vand.u32 %v1115, 4294901760
      %v1402 = vsub.f32 %v1115, %v1401
      %1403 = vmatmul.mubr.f32.gmra.mrb[0].mxu0 %v1402
      %v1404 = vpop.f32.mrb[0].mxu0
      %v1405 = vadd.f32 %v1311, %v1404
      %v1406 = vpop.f32.mrb[0].mxu0
      %1407 = vmatprep.mubr.f32.mxu0 0.0
      %v1408 = vand.u32 %v1118, 4294901760
      %v1409 = vsub.f32 %v1118, %v1408
      %1410 = vmatmul.mubr.f32.gmra.mrb[0].mxu0 %v1409
      %v1411 = vpop.f32.mrb[0].mxu0
      %v1412 = vadd.f32 %v1317, %v1411
      %v1413 = vpop.f32.mrb[0].mxu0
      %1414 = vmatprep.mubr.f32.mxu0 0.0
      %v1415 = vand.u32 %v1121, 4294901760
      %v1416 = vsub.f32 %v1121, %v1415
      %1417 = vmatmul.mubr.f32.gmra.mrb[0].mxu0 %v1416
      %v1418 = vpop.f32.mrb[0].mxu0
      %v1419 = vadd.f32 %v1323, %v1418
      %v1420 = vpop.f32.mrb[0].mxu0
      %1421 = vmatprep.mubr.f32.mxu0 0.0
      %v1422 = vand.u32 %v1124, 4294901760
      %v1423 = vsub.f32 %v1124, %v1422
      %1424 = vmatmul.mubr.f32.gmra.mrb[0].mxu0 %v1423
      %v1425 = vpop.f32.mrb[0].mxu0
      %v1426 = vadd.f32 %v1329, %v1425
      %v1427 = vpop.f32.mrb[0].mxu0
      %1428 = vdwg.mxu0
      %1429 = vmatprep.subr.mxu0 0.0
      %v1430 = vand.u32 %v1105, 4294901760
      %1431 = vmatpush1.msra.mxu0 %v1430
      %1432 = vmatprep.subr.mxu0 0.0
      %v1433 = vand.u32 %v1106, 4294901760
      %1434 = vmatpush1.msra.mxu0 %v1433
      %1435 = vmatprep.subr.mxu0 0.0
      %1436 = vmatpush1.msra.mxu0 0.0
      %1437 = vmatprep.subr.mxu0 0.0
      %1438 = vmatpush1.msra.mxu0 0.0
      %1439 = vmatprep.subr.mxu0 0.0
      %1440 = vmatpush1.msra.mxu0 0.0
      %1441 = vmatprep.subr.mxu0 0.0
      %1442 = vmatpush1.msra.mxu0 0.0
      %1443 = vmatprep.subr.mxu0 0.0
      %1444 = vmatpush1.msra.mxu0 0.0
      %1445 = vmatprep.subr.mxu0 0.0
      %1446 = vmatpush1.msra.mxu0 0.0
      %1447 = vmatprep.subr.mxu0 0.0
      %1448 = vmatpush1.msra.mxu0 0.0
      %1449 = vmatprep.subr.mxu0 0.0
      %1450 = vmatpush1.msra.mxu0 0.0
      %1451 = vmatprep.subr.mxu0 0.0
      %1452 = vmatpush1.msra.mxu0 0.0
      %1453 = vmatprep.subr.mxu0 0.0
      %1454 = vmatpush1.msra.mxu0 0.0
      %1455 = vmatprep.subr.mxu0 0.0
      %1456 = vmatpush1.msra.mxu0 0.0
      %1457 = vmatprep.subr.mxu0 0.0
      %1458 = vmatpush1.msra.mxu0 0.0
      %1459 = vmatprep.subr.mxu0 0.0
      %1460 = vmatpush1.msra.mxu0 0.0
      %1461 = vmatprep.subr.mxu0 0.0
      %1462 = vmatpush1.msra.mxu0 0.0
      %1463 = vmatprep.subr.mxu0 0.0
      %1464 = vmatpush1.msra.mxu0 0.0
      %1465 = vmatprep.subr.mxu0 0.0
      %1466 = vmatpush1.msra.mxu0 0.0
      %1467 = vmatprep.subr.mxu0 0.0
      %1468 = vmatpush1.msra.mxu0 0.0
      %1469 = vmatprep.subr.mxu0 0.0
      %1470 = vmatpush1.msra.mxu0 0.0
      %1471 = vmatprep.subr.mxu0 0.0
      %1472 = vmatpush1.msra.mxu0 0.0
      %1473 = vmatprep.subr.mxu0 0.0
      %1474 = vmatpush1.msra.mxu0 0.0
      %1475 = vmatprep.subr.mxu0 0.0
      %1476 = vmatpush1.msra.mxu0 0.0
      %1477 = vmatprep.subr.mxu0 0.0
      %1478 = vmatpush1.msra.mxu0 0.0
      %1479 = vmatprep.subr.mxu0 0.0
      %1480 = vmatpush1.msra.mxu0 0.0
      %1481 = vmatprep.subr.mxu0 0.0
      %1482 = vmatpush1.msra.mxu0 0.0
      %1483 = vmatprep.subr.mxu0 0.0
      %1484 = vmatpush1.msra.mxu0 0.0
      %1485 = vmatprep.subr.mxu0 0.0
      %1486 = vmatpush1.msra.mxu0 0.0
      %1487 = vmatprep.subr.mxu0 0.0
      %1488 = vmatpush1.msra.mxu0 0.0
      %1489 = vmatprep.subr.mxu0 0.0
      %1490 = vmatpush1.msra.mxu0 0.0
      %1491 = vmatprep.subr.mxu0 0.0
      %1492 = vmatpush1.msra.mxu0 0.0
      %1493 = vmatprep.subr.mxu0 0.0
      %1494 = vmatpush1.msra.mxu0 0.0
      %1495 = vmatprep.mubr.f32.mxu0 0.0
      %v1496 = vand.u32 %v1115, 4294901760
      %v1497 = vsub.f32 %v1115, %v1496
      %v1498 = vand.u32 %v1497, 4294901760
      %1499 = vmatmul.mubr.f32.gmra.mrb[0].mxu0 %v1498
      %v1500 = vpop.f32.mrb[0].mxu0
      %v1501 = vadd.f32 %v1405, %v1500
      %v1502 = vpop.f32.mrb[0].mxu0
      %1503 = vmatprep.mubr.f32.mxu0 0.0
      %v1504 = vand.u32 %v1118, 4294901760
      %v1505 = vsub.f32 %v1118, %v1504
      %v1506 = vand.u32 %v1505, 4294901760
      %1507 = vmatmul.mubr.f32.gmra.mrb[0].mxu0 %v1506
      %v1508 = vpop.f32.mrb[0].mxu0
      %v1509 = vadd.f32 %v1412, %v1508
      %v1510 = vpop.f32.mrb[0].mxu0
      %1511 = vmatprep.mubr.f32.mxu0 0.0
      %v1512 = vand.u32 %v1121, 4294901760
      %v1513 = vsub.f32 %v1121, %v1512
      %v1514 = vand.u32 %v1513, 4294901760
      %1515 = vmatmul.mubr.f32.gmra.mrb[0].mxu0 %v1514
      %v1516 = vpop.f32.mrb[0].mxu0
      %v1517 = vadd.f32 %v1419, %v1516
      %v1518 = vpop.f32.mrb[0].mxu0
      %1519 = vmatprep.mubr.f32.mxu0 0.0
      %v1520 = vand.u32 %v1124, 4294901760
      %v1521 = vsub.f32 %v1124, %v1520
      %v1522 = vand.u32 %v1521, 4294901760
      %1523 = vmatmul.mubr.f32.gmra.mrb[0].mxu0 %v1522
      %v1524 = vpop.f32.mrb[0].mxu0
      %v1525 = vadd.f32 %v1426, %v1524
      %v1526 = vpop.f32.mrb[0].mxu0
      %1527 = vdwg.mxu0
      %1528 = vmatprep.subr.mxu0 0.0
      %v1529 = vand.u32 %v1105, 4294901760
      %v1530 = vsub.f32 %v1105, %v1529
      %v1531 = vand.u32 %v1530, 4294901760
      %1532 = vmatpush1.msra.mxu0 %v1531
      %1533 = vmatprep.subr.mxu0 0.0
      %v1534 = vand.u32 %v1106, 4294901760
      %v1535 = vsub.f32 %v1106, %v1534
      %v1536 = vand.u32 %v1535, 4294901760
      %1537 = vmatpush1.msra.mxu0 %v1536
      %1538 = vmatprep.subr.mxu0 0.0
      %1539 = vmatpush1.msra.mxu0 0.0
      %1540 = vmatprep.subr.mxu0 0.0
      %1541 = vmatpush1.msra.mxu0 0.0
      %1542 = vmatprep.subr.mxu0 0.0
      %1543 = vmatpush1.msra.mxu0 0.0
      %1544 = vmatprep.subr.mxu0 0.0
      %1545 = vmatpush1.msra.mxu0 0.0
      %1546 = vmatprep.subr.mxu0 0.0
      %1547 = vmatpush1.msra.mxu0 0.0
      %1548 = vmatprep.subr.mxu0 0.0
      %1549 = vmatpush1.msra.mxu0 0.0
      %1550 = vmatprep.subr.mxu0 0.0
      %1551 = vmatpush1.msra.mxu0 0.0
      %1552 = vmatprep.subr.mxu0 0.0
      %1553 = vmatpush1.msra.mxu0 0.0
      %1554 = vmatprep.subr.mxu0 0.0
      %1555 = vmatpush1.msra.mxu0 0.0
      %1556 = vmatprep.subr.mxu0 0.0
      %1557 = vmatpush1.msra.mxu0 0.0
      %1558 = vmatprep.subr.mxu0 0.0
      %1559 = vmatpush1.msra.mxu0 0.0
      %1560 = vmatprep.subr.mxu0 0.0
      %1561 = vmatpush1.msra.mxu0 0.0
      %1562 = vmatprep.subr.mxu0 0.0
      %1563 = vmatpush1.msra.mxu0 0.0
      %1564 = vmatprep.subr.mxu0 0.0
      %1565 = vmatpush1.msra.mxu0 0.0
      %1566 = vmatprep.subr.mxu0 0.0
      %1567 = vmatpush1.msra.mxu0 0.0
      %1568 = vmatprep.subr.mxu0 0.0
      %1569 = vmatpush1.msra.mxu0 0.0
      %1570 = vmatprep.subr.mxu0 0.0
      %1571 = vmatpush1.msra.mxu0 0.0
      %1572 = vmatprep.subr.mxu0 0.0
      %1573 = vmatpush1.msra.mxu0 0.0
      %1574 = vmatprep.subr.mxu0 0.0
      %1575 = vmatpush1.msra.mxu0 0.0
      %1576 = vmatprep.subr.mxu0 0.0
      %1577 = vmatpush1.msra.mxu0 0.0
      %1578 = vmatprep.subr.mxu0 0.0
      %1579 = vmatpush1.msra.mxu0 0.0
      %1580 = vmatprep.subr.mxu0 0.0
      %1581 = vmatpush1.msra.mxu0 0.0
      %1582 = vmatprep.subr.mxu0 0.0
      %1583 = vmatpush1.msra.mxu0 0.0
      %1584 = vmatprep.subr.mxu0 0.0
      %1585 = vmatpush1.msra.mxu0 0.0
      %1586 = vmatprep.subr.mxu0 0.0
      %1587 = vmatpush1.msra.mxu0 0.0
      %1588 = vmatprep.subr.mxu0 0.0
      %1589 = vmatpush1.msra.mxu0 0.0
      %1590 = vmatprep.subr.mxu0 0.0
      %1591 = vmatpush1.msra.mxu0 0.0
      %1592 = vmatprep.subr.mxu0 0.0
      %1593 = vmatpush1.msra.mxu0 0.0
      %1594 = vmatprep.subr.mxu0 0.0
      %1595 = vmatpush1.msra.mxu0 0.0
      %1596 = vmatprep.subr.mxu0 0.0
      %1597 = vmatpush1.msra.mxu0 0.0
      %1598 = vmatprep.mubr.f32.mxu0 0.0
      %v1599 = vand.u32 %v1115, 4294901760
      %1600 = vmatmul.mubr.f32.gmra.mrb[0].mxu0 %v1599
      %v1601 = vpop.f32.mrb[0].mxu0
      %v1602 = vadd.f32 %v1501, %v1601
      %v1603 = vpop.f32.mrb[0].mxu0
      %1604 = vmatprep.mubr.f32.mxu0 0.0
      %v1605 = vand.u32 %v1118, 4294901760
      %1606 = vmatmul.mubr.f32.gmra.mrb[0].mxu0 %v1605
      %v1607 = vpop.f32.mrb[0].mxu0
      %v1608 = vadd.f32 %v1509, %v1607
      %v1609 = vpop.f32.mrb[0].mxu0
      %1610 = vmatprep.mubr.f32.mxu0 0.0
      %v1611 = vand.u32 %v1121, 4294901760
      %1612 = vmatmul.mubr.f32.gmra.mrb[0].mxu0 %v1611
      %v1613 = vpop.f32.mrb[0].mxu0
      %v1614 = vadd.f32 %v1517, %v1613
      %v1615 = vpop.f32.mrb[0].mxu0
      %1616 = vmatprep.mubr.f32.mxu0 0.0
      %v1617 = vand.u32 %v1124, 4294901760
      %1618 = vmatmul.mubr.f32.gmra.mrb[0].mxu0 %v1617
      %v1619 = vpop.f32.mrb[0].mxu0
      %v1620 = vadd.f32 %v1525, %v1619
      %v1621 = vpop.f32.mrb[0].mxu0
      %1622 = vdwg.mxu0
      %1623 = vmatprep.subr.mxu0 0.0
      %v1624 = vand.u32 %v1105, 4294901760
      %1625 = vmatpush1.msra.mxu0 %v1624
      %1626 = vmatprep.subr.mxu0 0.0
      %v1627 = vand.u32 %v1106, 4294901760
      %1628 = vmatpush1.msra.mxu0 %v1627
      %1629 = vmatprep.subr.mxu0 0.0
      %1630 = vmatpush1.msra.mxu0 0.0
      %1631 = vmatprep.subr.mxu0 0.0
      %1632 = vmatpush1.msra.mxu0 0.0
      %1633 = vmatprep.subr.mxu0 0.0
      %1634 = vmatpush1.msra.mxu0 0.0
      %1635 = vmatprep.subr.mxu0 0.0
      %1636 = vmatpush1.msra.mxu0 0.0
      %1637 = vmatprep.subr.mxu0 0.0
      %1638 = vmatpush1.msra.mxu0 0.0
      %1639 = vmatprep.subr.mxu0 0.0
      %1640 = vmatpush1.msra.mxu0 0.0
      %1641 = vmatprep.subr.mxu0 0.0
      %1642 = vmatpush1.msra.mxu0 0.0
      %1643 = vmatprep.subr.mxu0 0.0
      %1644 = vmatpush1.msra.mxu0 0.0
      %1645 = vmatprep.subr.mxu0 0.0
      %1646 = vmatpush1.msra.mxu0 0.0
      %1647 = vmatprep.subr.mxu0 0.0
      %1648 = vmatpush1.msra.mxu0 0.0
      %1649 = vmatprep.subr.mxu0 0.0
      %1650 = vmatpush1.msra.mxu0 0.0
      %1651 = vmatprep.subr.mxu0 0.0
      %1652 = vmatpush1.msra.mxu0 0.0
      %1653 = vmatprep.subr.mxu0 0.0
      %1654 = vmatpush1.msra.mxu0 0.0
      %1655 = vmatprep.subr.mxu0 0.0
      %1656 = vmatpush1.msra.mxu0 0.0
      %1657 = vmatprep.subr.mxu0 0.0
      %1658 = vmatpush1.msra.mxu0 0.0
      %1659 = vmatprep.subr.mxu0 0.0
      %1660 = vmatpush1.msra.mxu0 0.0
      %1661 = vmatprep.subr.mxu0 0.0
      %1662 = vmatpush1.msra.mxu0 0.0
      %1663 = vmatprep.subr.mxu0 0.0
      %1664 = vmatpush1.msra.mxu0 0.0
      %1665 = vmatprep.subr.mxu0 0.0
      %1666 = vmatpush1.msra.mxu0 0.0
      %1667 = vmatprep.subr.mxu0 0.0
      %1668 = vmatpush1.msra.mxu0 0.0
      %1669 = vmatprep.subr.mxu0 0.0
      %1670 = vmatpush1.msra.mxu0 0.0
      %1671 = vmatprep.subr.mxu0 0.0
      %1672 = vmatpush1.msra.mxu0 0.0
      %1673 = vmatprep.subr.mxu0 0.0
      %1674 = vmatpush1.msra.mxu0 0.0
      %1675 = vmatprep.subr.mxu0 0.0
      %1676 = vmatpush1.msra.mxu0 0.0
      %1677 = vmatprep.subr.mxu0 0.0
      %1678 = vmatpush1.msra.mxu0 0.0
      %1679 = vmatprep.subr.mxu0 0.0
      %1680 = vmatpush1.msra.mxu0 0.0
      %1681 = vmatprep.subr.mxu0 0.0
      %1682 = vmatpush1.msra.mxu0 0.0
      %1683 = vmatprep.subr.mxu0 0.0
      %1684 = vmatpush1.msra.mxu0 0.0
      %1685 = vmatprep.subr.mxu0 0.0
      %1686 = vmatpush1.msra.mxu0 0.0
      %1687 = vmatprep.subr.mxu0 0.0
      %1688 = vmatpush1.msra.mxu0 0.0
      %1689 = vmatprep.mubr.f32.mxu0 0.0
      %v1690 = vand.u32 %v1115, 4294901760
      %1691 = vmatmul.mubr.f32.gmra.mrb[0].mxu0 %v1690
      %v1692 = vpop.f32.mrb[0].mxu0
      %v1693 = vadd.f32 %v1602, %v1692
      %v1694 = vpop.f32.mrb[0].mxu0
      %1695 = vmatprep.mubr.f32.mxu0 0.0
      %v1696 = vand.u32 %v1118, 4294901760
      %1697 = vmatmul.mubr.f32.gmra.mrb[0].mxu0 %v1696
      %v1698 = vpop.f32.mrb[0].mxu0
      %v1699 = vadd.f32 %v1608, %v1698
      %v1700 = vpop.f32.mrb[0].mxu0
      %1701 = vmatprep.mubr.f32.mxu0 0.0
      %v1702 = vand.u32 %v1121, 4294901760
      %1703 = vmatmul.mubr.f32.gmra.mrb[0].mxu0 %v1702
      %v1704 = vpop.f32.mrb[0].mxu0
      %v1705 = vadd.f32 %v1614, %v1704
      %v1706 = vpop.f32.mrb[0].mxu0
      %1707 = vmatprep.mubr.f32.mxu0 0.0
      %v1708 = vand.u32 %v1124, 4294901760
      %1709 = vmatmul.mubr.f32.gmra.mrb[0].mxu0 %v1708
      %v1710 = vpop.f32.mrb[0].mxu0
      %v1711 = vadd.f32 %v1620, %v1710
      %v1712 = vpop.f32.mrb[0].mxu0
      %1713 = vdwg.mxu0
      %v1714 = vld [vmem:[%s5] sm:$0x1]
      %v1715 = vld [vmem:[%s6] sm:$0x1]
      %vm1716 = vcmask 261120
      %v1717 = vsel %vm1716, %v1693, 0.0
      %1718 = vadd.xlane.f32.xlu0 %v1717
      %v1719 = vpop.xlane.xlu0 %1718
      %v1720 = vsel %vm1716, %v1699, 0.0
      %1721 = vadd.xlane.f32.xlu0 %v1720
      %v1722 = vpop.xlane.xlu0 %1721
      %v1723 = vsel %vm1716, %v1705, 0.0
      %1724 = vadd.xlane.f32.xlu0 %v1723
      %v1725 = vpop.xlane.xlu0 %1724
      %v1726 = vsel %vm1716, %v1711, 0.0
      %1727 = vadd.xlane.f32.xlu0 %v1726
      %v1728 = vpop.xlane.xlu0 %1727
      %v1729 = vrcp.pop 32.0
      %v1730 = vmul.f32 %v1719, %v1729
      %v1731 = vmul.f32 %v1722, %v1729
      %v1732 = vmul.f32 %v1725, %v1729
      %v1733 = vmul.f32 %v1728, %v1729
      %v1734 = vsub.f32 %v1693, %v1730
      %v1735 = vsub.f32 %v1699, %v1731
      %v1736 = vsub.f32 %v1705, %v1732
      %v1737 = vsub.f32 %v1711, %v1733
      %v1738 = vmul.f32 %v1734, %v1734
      %v1739 = vmul.f32 %v1735, %v1735
      %v1740 = vmul.f32 %v1736, %v1736
      %v1741 = vmul.f32 %v1737, %v1737
      %v1742 = vsel %vm1716, %v1738, 0.0
      %1743 = vadd.xlane.f32.xlu0 %v1742
      %v1744 = vpop.xlane.xlu0 %1743
      %v1745 = vsel %vm1716, %v1739, 0.0
      %1746 = vadd.xlane.f32.xlu0 %v1745
      %v1747 = vpop.xlane.xlu0 %1746
      %v1748 = vsel %vm1716, %v1740, 0.0
      %1749 = vadd.xlane.f32.xlu0 %v1748
      %v1750 = vpop.xlane.xlu0 %1749
      %v1751 = vsel %vm1716, %v1741, 0.0
      %1752 = vadd.xlane.f32.xlu0 %v1751
      %v1753 = vpop.xlane.xlu0 %1752
      %v1754 = vmul.f32 %v1744, %v1729
      %v1755 = vmul.f32 %v1747, %v1729
      %v1756 = vmul.f32 %v1750, %v1729
      %v1757 = vmul.f32 %v1753, %v1729
      %v1758 = vadd.f32 %v1754, 1e-05
      %v1759 = vadd.f32 %v1755, 1e-05
      %v1760 = vadd.f32 %v1756, 1e-05
      %v1761 = vadd.f32 %v1757, 1e-05
      %v1762 = vrsqrt.pop %v1758
      %v1763 = vrsqrt.pop %v1759
      %v1764 = vrsqrt.pop %v1760
      %v1765 = vrsqrt.pop %v1761
      %v1766 = vmul.f32 %v1734, %v1762
      %v1767 = vmul.f32 %v1735, %v1763
      %v1768 = vmul.f32 %v1736, %v1764
      %v1769 = vmul.f32 %v1737, %v1765
      %v1771 = vlaneseq
      %v1772 = vshrl.u32 %v1771, 7
      %v1773 = vsub.s32 0, %v1772
      %v1774 = vrot.slane %v1714, %v1773
      %v1776 = vmul.f32 %v1766, %v1774
      %v1777 = vmul.f32 %v1767, %v1774
      %v1778 = vmul.f32 %v1768, %v1774
      %v1779 = vmul.f32 %v1769, %v1774
      %v1781 = vlaneseq
      %v1782 = vshrl.u32 %v1781, 7
      %v1783 = vsub.s32 0, %v1782
      %v1784 = vrot.slane %v1715, %v1783
      %v1786 = vadd.f32 %v1776, %v1784
      %v1787 = vadd.f32 %v1777, %v1784
      %v1788 = vadd.f32 %v1778, %v1784
      %v1789 = vadd.f32 %v1779, %v1784
      %v1790 = vld [vmem:[%s7] sm:$0x1]
      %v1792 = vlaneseq
      %v1793 = vshrl.u32 %v1792, 7
      %v1794 = vsub.s32 0, %v1793
      %v1795 = vrot.slane %v1790, %v1794
      %v1797 = vmul.f32 %v1084, %v1795
      %v1798 = vmul.f32 %v1090, %v1795
      %v1799 = vmul.f32 %v1096, %v1795
      %v1800 = vmul.f32 %v1102, %v1795
      %v1801 = vsel %vm1716, %v1797, 0.0
      %1802 = vadd.xlane.f32.xlu0 %v1801
      %v1803 = vpop.xlane.xlu0 %1802
      %v1804 = vsel %vm1716, %v1798, 0.0
      %1805 = vadd.xlane.f32.xlu0 %v1804
      %v1806 = vpop.xlane.xlu0 %1805
      %v1807 = vsel %vm1716, %v1799, 0.0
      %1808 = vadd.xlane.f32.xlu0 %v1807
      %v1809 = vpop.xlane.xlu0 %1808
      %v1810 = vsel %vm1716, %v1800, 0.0
      %1811 = vadd.xlane.f32.xlu0 %v1810
      %v1812 = vpop.xlane.xlu0 %1811
      %v1813 = vld [vmem:[#allocation2] sm:$0x1]
      %v1815 = vlaneseq
      %v1816 = vshrl.u32 %v1815, 7
      %v1817 = vsub.s32 0, %v1816
      %v1818 = vrot.slane %v1813, %v1817
      %v1820 = vadd.f32 %v1803, %v1818
      %v1821 = vadd.f32 %v1806, %v1818
      %v1822 = vadd.f32 %v1809, %v1818
      %v1823 = vadd.f32 %v1812, %v1818
      %v1824 = vmul.f32 %v1786, %v1795
      %v1825 = vmul.f32 %v1787, %v1795
      %v1826 = vmul.f32 %v1788, %v1795
      %v1827 = vmul.f32 %v1789, %v1795
      %v1828 = vsel %vm1716, %v1824, 0.0
      %1829 = vadd.xlane.f32.xlu0 %v1828
      %v1830 = vpop.xlane.xlu0 %1829
      %v1831 = vsel %vm1716, %v1825, 0.0
      %1832 = vadd.xlane.f32.xlu0 %v1831
      %v1833 = vpop.xlane.xlu0 %1832
      %v1834 = vsel %vm1716, %v1826, 0.0
      %1835 = vadd.xlane.f32.xlu0 %v1834
      %v1836 = vpop.xlane.xlu0 %1835
      %v1837 = vsel %vm1716, %v1827, 0.0
      %1838 = vadd.xlane.f32.xlu0 %v1837
      %v1839 = vpop.xlane.xlu0 %1838
      %v1840 = vadd.f32 %v1830, %v1818
      %v1841 = vadd.f32 %v1833, %v1818
      %v1842 = vadd.f32 %v1836, %v1818
      %v1843 = vadd.f32 %v1839, %v1818
      %vm1844 = vcmp.gt.f32.partialorder %v1820, 0.0
      %vm1845 = vcmp.gt.f32.partialorder %v1821, 0.0
      %vm1846 = vcmp.gt.f32.partialorder %v1822, 0.0
      %vm1847 = vcmp.gt.f32.partialorder %v1823, 0.0
      %v1848 = vmul.f32 %v1820, 0.01
      %v1849 = vmul.f32 %v1821, 0.01
      %v1850 = vmul.f32 %v1822, 0.01
      %v1851 = vmul.f32 %v1823, 0.01
      %v1852 = vsel %vm1844, %v1820, %v1848
      %v1853 = vsel %vm1845, %v1821, %v1849
      %v1854 = vsel %vm1846, %v1822, %v1850
      %v1855 = vsel %vm1847, %v1823, %v1851
      %vm1856 = vcmp.gt.f32.partialorder %v1840, 0.0
      %vm1857 = vcmp.gt.f32.partialorder %v1841, 0.0
      %vm1858 = vcmp.gt.f32.partialorder %v1842, 0.0
      %vm1859 = vcmp.gt.f32.partialorder %v1843, 0.0
      %v1860 = vmul.f32 %v1840, 0.01
      %v1861 = vmul.f32 %v1841, 0.01
      %v1862 = vmul.f32 %v1842, 0.01
      %v1863 = vmul.f32 %v1843, 0.01
      %v1864 = vsel %vm1856, %v1840, %v1860
      %v1865 = vsel %vm1857, %v1841, %v1861
      %v1866 = vsel %vm1858, %v1842, %v1862
      %v1867 = vsel %vm1859, %v1843, %v1863
      %v1868 = vmax.f32 %v1852, %v1864
      %v1869 = vmax.f32 %v1853, %v1865
      %v1870 = vmax.f32 %v1854, %v1866
      %v1871 = vmax.f32 %v1855, %v1867
      %v1872 = vsub.f32 %v1852, %v1868
      %v1873 = vsub.f32 %v1853, %v1869
      %v1874 = vsub.f32 %v1854, %v1870
      %v1875 = vsub.f32 %v1855, %v1871
      %v1876 = vmul.f32 %v1872, 1.442695
      %v1877 = vpow.pop %v1876
      %v1878 = vmul.f32 %v1873, 1.442695
      %v1879 = vpow.pop %v1878
      %v1880 = vmul.f32 %v1874, 1.442695
      %v1881 = vpow.pop %v1880
      %v1882 = vmul.f32 %v1875, 1.442695
      %v1883 = vpow.pop %v1882
      %v1884 = vsub.f32 %v1864, %v1868
      %v1885 = vsub.f32 %v1865, %v1869
      %v1886 = vsub.f32 %v1866, %v1870
      %v1887 = vsub.f32 %v1867, %v1871
      %v1888 = vmul.f32 %v1884, 1.442695
      %v1889 = vpow.pop %v1888
      %v1890 = vmul.f32 %v1885, 1.442695
      %v1891 = vpow.pop %v1890
      %v1892 = vmul.f32 %v1886, 1.442695
      %v1893 = vpow.pop %v1892
      %v1894 = vmul.f32 %v1887, 1.442695
      %v1895 = vpow.pop %v1894
      %v1896 = vadd.f32 %v1877, %v1889
      %v1897 = vadd.f32 %v1879, %v1891
      %v1898 = vadd.f32 %v1881, %v1893
      %v1899 = vadd.f32 %v1883, %v1895
      %v1900 = vrcp.pop %v1896
      %v1901 = vrcp.pop %v1897
      %v1902 = vrcp.pop %v1898
      %v1903 = vrcp.pop %v1899
      %v1904 = vmul.f32 %v1877, %v1900
      %v1905 = vmul.f32 %v1879, %v1901
      %v1906 = vmul.f32 %v1881, %v1902
      %v1907 = vmul.f32 %v1883, %v1903
      %1909 = vset.pattern.permute.xlu0 0
      %1910 = vperm.xlu0 %1909, %v1904
      %v1911 = vpop.permute.xlu0 %1910
      %1914 = vset.pattern.permute.xlu0 0
      %1915 = vperm.xlu0 %1914, %v1905
      %v1916 = vpop.permute.xlu0 %1915
      %1919 = vset.pattern.permute.xlu0 0
      %1920 = vperm.xlu0 %1919, %v1906
      %v1921 = vpop.permute.xlu0 %1920
      %1924 = vset.pattern.permute.xlu0 0
      %1925 = vperm.xlu0 %1924, %v1907
      %v1926 = vpop.permute.xlu0 %1925
      %v1928 = vmul.f32 %v1911, %v1084
      %v1929 = vmul.f32 %v1916, %v1090
      %v1930 = vmul.f32 %v1921, %v1096
      %v1931 = vmul.f32 %v1926, %v1102
      %v1932 = vmul.f32 %v1889, %v1900
      %v1933 = vmul.f32 %v1891, %v1901
      %v1934 = vmul.f32 %v1893, %v1902
      %v1935 = vmul.f32 %v1895, %v1903
      %1937 = vset.pattern.permute.xlu0 0
      %1938 = vperm.xlu0 %1937, %v1932
      %v1939 = vpop.permute.xlu0 %1938
      %1942 = vset.pattern.permute.xlu0 0
      %1943 = vperm.xlu0 %1942, %v1933
      %v1944 = vpop.permute.xlu0 %1943
      %1947 = vset.pattern.permute.xlu0 0
      %1948 = vperm.xlu0 %1947, %v1934
      %v1949 = vpop.permute.xlu0 %1948
      %1952 = vset.pattern.permute.xlu0 0
      %1953 = vperm.xlu0 %1952, %v1935
      %v1954 = vpop.permute.xlu0 %1953
      %v1956 = vmul.f32 %v1939, %v1786
      %v1957 = vmul.f32 %v1944, %v1787
      %v1958 = vmul.f32 %v1949, %v1788
      %v1959 = vmul.f32 %v1954, %v1789
      %v1960 = vadd.f32 %v1928, %v1956
      %v1961 = vadd.f32 %v1929, %v1957
      %v1962 = vadd.f32 %v1930, %v1958
      %v1963 = vadd.f32 %v1931, %v1959
      %v1964 = vld [vmem:[%s9] sm:$0x1]
      %v1966 = vlaneseq
      %v1967 = vshrl.u32 %v1966, 7
      %v1968 = vsub.s32 0, %v1967
      %v1969 = vrot.slane %v1964, %v1968
      %v1971 = vmul.f32 %v1960, %v1969
      %v1972 = vmul.f32 %v1961, %v1969
      %v1973 = vmul.f32 %v1962, %v1969
      %v1974 = vmul.f32 %v1963, %v1969
      %v1975 = vsel %vm1716, %v1971, 0.0
      %1976 = vadd.xlane.f32.xlu0 %v1975
      %v1977 = vpop.xlane.xlu0 %1976
      %v1978 = vsel %vm1716, %v1972, 0.0
      %1979 = vadd.xlane.f32.xlu0 %v1978
      %v1980 = vpop.xlane.xlu0 %1979
      %v1981 = vsel %vm1716, %v1973, 0.0
      %1982 = vadd.xlane.f32.xlu0 %v1981
      %v1983 = vpop.xlane.xlu0 %1982
      %v1984 = vsel %vm1716, %v1974, 0.0
      %1985 = vadd.xlane.f32.xlu0 %v1984
      %v1986 = vpop.xlane.xlu0 %1985
      %v1987 = vld [vmem:[%s10] sm:$0x1]
      %v1989 = vlaneseq
      %v1990 = vshrl.u32 %v1989, 7
      %v1991 = vsub.s32 0, %v1990
      %v1992 = vrot.slane %v1987, %v1991
      %v1994 = vmul.f32 %v1084, %v1992
      %v1995 = vmul.f32 %v1090, %v1992
      %v1996 = vmul.f32 %v1096, %v1992
      %v1997 = vmul.f32 %v1102, %v1992
      %v1998 = vsel %vm1716, %v1994, 0.0
      %1999 = vadd.xlane.f32.xlu0 %v1998
      %v2000 = vpop.xlane.xlu0 %1999
      %v2001 = vsel %vm1716, %v1995, 0.0
      %2002 = vadd.xlane.f32.xlu0 %v2001
      %v2003 = vpop.xlane.xlu0 %2002
      %v2004 = vsel %vm1716, %v1996, 0.0
      %2005 = vadd.xlane.f32.xlu0 %v2004
      %v2006 = vpop.xlane.xlu0 %2005
      %v2007 = vsel %vm1716, %v1997, 0.0
      %2008 = vadd.xlane.f32.xlu0 %v2007
      %v2009 = vpop.xlane.xlu0 %2008
      %v2010 = vadd.f32 %v1977, %v2000
      %v2011 = vadd.f32 %v1980, %v2003
      %v2012 = vadd.f32 %v1983, %v2006
      %v2013 = vadd.f32 %v1986, %v2009
      %v2014 = vxor.u32 %v2010, 2147483648
      %v2015 = vxor.u32 %v2011, 2147483648
      %v2016 = vxor.u32 %v2012, 2147483648
      %v2017 = vxor.u32 %v2013, 2147483648
      %v2018 = vmul.f32 %v2014, 1.442695
      %v2019 = vpow.pop %v2018
      %v2020 = vmul.f32 %v2015, 1.442695
      %v2021 = vpow.pop %v2020
      %v2022 = vmul.f32 %v2016, 1.442695
      %v2023 = vpow.pop %v2022
      %v2024 = vmul.f32 %v2017, 1.442695
      %v2025 = vpow.pop %v2024
      %v2026 = vadd.f32 %v2019, 1.0
      %v2027 = vadd.f32 %v2021, 1.0
      %v2028 = vadd.f32 %v2023, 1.0
      %v2029 = vadd.f32 %v2025, 1.0
      %v2030 = vrcp.pop %v2026
      %v2031 = vmul.f32 1.0, %v2030
      %v2032 = vrcp.pop %v2027
      %v2033 = vmul.f32 1.0, %v2032
      %v2034 = vrcp.pop %v2028
      %v2035 = vmul.f32 1.0, %v2034
      %v2036 = vrcp.pop %v2029
      %v2037 = vmul.f32 1.0, %v2036
      %v2038 = vmul.f32 %v2031, %v1084
      %v2039 = vmul.f32 %v2033, %v1090
      %v2040 = vmul.f32 %v2035, %v1096
      %v2041 = vmul.f32 %v2037, %v1102
      %v2042 = vsub.f32 1.0, %v2031
      %v2043 = vsub.f32 1.0, %v2033
      %v2044 = vsub.f32 1.0, %v2035
      %v2045 = vsub.f32 1.0, %v2037
      %v2046 = vmul.f32 %v2042, %v1960
      %v2047 = vmul.f32 %v2043, %v1961
      %v2048 = vmul.f32 %v2044, %v1962
      %v2049 = vmul.f32 %v2045, %v1963
      %v2050 = vadd.f32 %v2038, %v2046
      %v2051 = vadd.f32 %v2039, %v2047
      %v2052 = vadd.f32 %v2040, %v2048
      %v2053 = vadd.f32 %v2041, %v2049
      %v2054 = vld [vmem:[%s11] sm:$0x1]
      %v2055 = vld [vmem:[%s12] sm:$0x1]
      %v2056 = vsel %vm1716, %v2050, 0.0
      %2057 = vadd.xlane.f32.xlu0 %v2056
      %v2058 = vpop.xlane.xlu0 %2057
      %v2059 = vsel %vm1716, %v2051, 0.0
      %2060 = vadd.xlane.f32.xlu0 %v2059
      %v2061 = vpop.xlane.xlu0 %2060
      %v2062 = vsel %vm1716, %v2052, 0.0
      %2063 = vadd.xlane.f32.xlu0 %v2062
      %v2064 = vpop.xlane.xlu0 %2063
      %v2065 = vsel %vm1716, %v2053, 0.0
      %2066 = vadd.xlane.f32.xlu0 %v2065
      %v2067 = vpop.xlane.xlu0 %2066
      %v2068 = vmul.f32 %v2058, %v1729
      %v2069 = vmul.f32 %v2061, %v1729
      %v2070 = vmul.f32 %v2064, %v1729
      %v2071 = vmul.f32 %v2067, %v1729
      %v2072 = vsub.f32 %v2050, %v2068
      %v2073 = vsub.f32 %v2051, %v2069
      %v2074 = vsub.f32 %v2052, %v2070
      %v2075 = vsub.f32 %v2053, %v2071
      %v2076 = vmul.f32 %v2072, %v2072
      %v2077 = vmul.f32 %v2073, %v2073
      %v2078 = vmul.f32 %v2074, %v2074
      %v2079 = vmul.f32 %v2075, %v2075
      %v2080 = vsel %vm1716, %v2076, 0.0
      %2081 = vadd.xlane.f32.xlu0 %v2080
      %v2082 = vpop.xlane.xlu0 %2081
      %v2083 = vsel %vm1716, %v2077, 0.0
      %2084 = vadd.xlane.f32.xlu0 %v2083
      %v2085 = vpop.xlane.xlu0 %2084
      %v2086 = vsel %vm1716, %v2078, 0.0
      %2087 = vadd.xlane.f32.xlu0 %v2086
      %v2088 = vpop.xlane.xlu0 %2087
      %v2089 = vsel %vm1716, %v2079, 0.0
      %2090 = vadd.xlane.f32.xlu0 %v2089
      %v2091 = vpop.xlane.xlu0 %2090
      %v2092 = vmul.f32 %v2082, %v1729
      %v2093 = vmul.f32 %v2085, %v1729
      %v2094 = vmul.f32 %v2088, %v1729
      %v2095 = vmul.f32 %v2091, %v1729
      %v2096 = vadd.f32 %v2092, 1e-05
      %v2097 = vadd.f32 %v2093, 1e-05
      %v2098 = vadd.f32 %v2094, 1e-05
      %v2099 = vadd.f32 %v2095, 1e-05
      %v2100 = vrsqrt.pop %v2096
      %v2101 = vrsqrt.pop %v2097
      %v2102 = vrsqrt.pop %v2098
      %v2103 = vrsqrt.pop %v2099
      %v2104 = vmul.f32 %v2072, %v2100
      %v2105 = vmul.f32 %v2073, %v2101
      %v2106 = vmul.f32 %v2074, %v2102
      %v2107 = vmul.f32 %v2075, %v2103
      %v2109 = vlaneseq
      %v2110 = vshrl.u32 %v2109, 7
      %v2111 = vsub.s32 0, %v2110
      %v2112 = vrot.slane %v2054, %v2111
      %v2114 = vmul.f32 %v2104, %v2112
      %v2115 = vmul.f32 %v2105, %v2112
      %v2116 = vmul.f32 %v2106, %v2112
      %v2117 = vmul.f32 %v2107, %v2112
      %v2119 = vlaneseq
      %v2120 = vshrl.u32 %v2119, 7
      %v2121 = vsub.s32 0, %v2120
      %v2122 = vrot.slane %v2055, %v2121
      %v2124 = vadd.f32 %v2114, %v2122
      %v2125 = vadd.f32 %v2115, %v2122
      %v2126 = vadd.f32 %v2116, %v2122
      %v2127 = vadd.f32 %v2117, %v2122
      %v2128 = vmax.f32 %v2124, 0.0
      %v2129 = vmax.f32 %v2125, 0.0
      %v2130 = vmax.f32 %v2126, 0.0
      %v2131 = vmax.f32 %v2127, 0.0
      %2132 = vst.msk [vmem:[%s466] sm:$0xff] %vm1716, %v2128
      %2133 = vst.msk [vmem:[%s466 + $0x8] sm:$0xff] %vm1716, %v2129
      %2134 = vst.msk [vmem:[%s466 + $0x10] sm:$0xff] %vm1716, %v2130
      %2135 = vst.msk [vmem:[%s466 + $0x18] sm:$0xff] %vm1716, %v2131
      %s2136 = smul.u32 4, %s26
      %p2137 = scmp.lt.s32.totalorder %s2136, 11
      %s2138 = scalar_select %p2137, %s2136, 11
      %s2139 = smul.addr %s2138, 8
      %s2140 = scalar_lea.vmem %s13, %s2139
      // Predicated region
      $region73: #{atom2bond_forward.1} parent=71 // pred_check
        %p2141 = pneg %p327
      $region74: #{atom2bond_forward.1} parent=71 // pred_check_branch
        %2143 = sbr.rel (%p2141) target = $region76
      $region75: #{atom2bond_forward.1} parent=71 // pred_region
        %s2144 = smul.u32 4, %s26
      $region76: #{atom2bond_forward.1} parent=71 // pred_fallthru
        _
    $region72: #{atom2bond_forward.1} parent=5 // pred_fallthru
      _
    %p2145 = scmp.le.s32.totalorder 2, %s21
    // Predicated region
    $region77: #{atom2bond_forward.1} parent=5 // pred_check
      %p2146 = pneg %p2145
    $region78: #{atom2bond_forward.1} parent=5 // pred_check_branch
      %2148 = sbr.rel (%p2146) target = $region80
    $region79: #{atom2bond_forward.1} parent=5 // pred_region
      %s2149 = ssub.s32 %s21, 2
      // Predicated region
      $region81: #{atom2bond_forward.1} parent=79 // pred_check
        %p2150 = pneg %p333
      $region82: #{atom2bond_forward.1} parent=79 // pred_check_branch
        %2152 = sbr.rel (%p2150) target = $region84
      $region83: #{atom2bond_forward.1} parent=79 // pred_region
        %s2153 = smul.u32 4, %s27
        %p2154 = scmp.lt.s32.totalorder %s2153, 11
        %s2155 = scalar_select %p2154, %s2153, 11
        %s2156 = smul.addr %s2155, 8
        %s2157 = scalar_lea.vmem %s13, %s2156
      $region84: #{atom2bond_forward.1} parent=79 // pred_fallthru
        _
    $region80: #{atom2bond_forward.1} parent=5 // pred_fallthru
      _
  $region6: #{atom2bond_forward.1} parent=0 // loop_footer
    %s25 = sadd.s32 1, %s21
  $region7: #{atom2bond_forward.1} parent=0 // loop_footer_branch
    %20 = sbr.rel target = $region3
  $region8: #{atom2bond_forward.1} parent=0 // loop_exit
    _

</llo_original>
